<compile_context>
chip_gen: v6e
topology: v6e:2x2x1
jax: 0.10.0
libtpu: 0.0.40
codegen_flags: <defaults>
</compile_context>

<pallas_src>
import functools
import numpy as np
import jax
import jax.numpy as jnp
from jax.experimental import pallas as pl
from jax.experimental.pallas import tpu as pltpu

# synthetic `{backbone}_block_out_channel` (mini-VGG-like channel progression)
HNN_BLOCK_OUT_CHANNEL = [8, 16, 32, 64, 64]
NUM_LEVELS = len(HNN_BLOCK_OUT_CHANNEL)


# --------------------------------------------------------------------------
# Pallas kernel (fully fused HNN head)
# --------------------------------------------------------------------------
def _hnn_fused_kernel(*refs):
    """Fused HNN head for one (batch, row-tile) grid cell.

    refs (inputs, then output):
      for each level i in 0..4:
        feat2d_i : (1, h_i, w_i*C_i) VMEM  -- NHWC features, lane-dense w*C
        rwtw_i   : (w_i*C_i, W)      VMEM  -- comb_w[i] * (aggre_w_i ⊗ Rwt_i)
        rh_i     : (TH, h_i)         VMEM  -- row tile of bilinear row matrix
      cb_ref     : (1,)              SMEM  -- comb_b + sum_i comb_w[i]*aggre_b[i]
      out_ref    : (1, TH, W)        VMEM
    """
    out_ref = refs[-1]
    cb_ref = refs[-2]
    acc = None
    for i in range(NUM_LEVELS):
        f_ref, rw_ref, rh_ref = refs[3 * i], refs[3 * i + 1], refs[3 * i + 2]
        # 1x1 aggre conv + combine weight + width-upsample fused into one MXU
        # matmul:  z[h, W] = sum_{w,c} feat[h, w, c] * aggre_w[c] * cw * Rwt[w, W]
        z = jnp.dot(f_ref[0], rw_ref[...], preferred_element_type=jnp.float32)
        # height upsample for this output row tile: up[TH, W] = Rh[TH, h] @ z
        up = jnp.dot(rh_ref[...], z, preferred_element_type=jnp.float32)
        acc = up if acc is None else acc + up
    out_ref[0] = jax.nn.sigmoid(acc + cb_ref[0])


# --------------------------------------------------------------------------
# pallas_call wrapper
# --------------------------------------------------------------------------
def _pick_row_tile(H):
    """Largest row tile <= 256 dividing H (keeps VMEM bounded on v7x)."""
    for t in (256, 128, 64, 32, 16, 8):
        if t <= H and H % t == 0:
            return t
    return H


def hnn_head(feats2d, rwtw_mats, rh_mats, cb_const, H, W):
    N = int(feats2d[0].shape[0])
    TH = _pick_row_tile(H)

    in_specs = []
    args = []
    for f, rw, rh in zip(feats2d, rwtw_mats, rh_mats):
        h, wc = int(f.shape[1]), int(f.shape[2])
        in_specs.append(pl.BlockSpec((1, h, wc), lambda n, t: (n, 0, 0)))
        in_specs.append(pl.BlockSpec((wc, W), lambda n, t: (0, 0)))
        in_specs.append(pl.BlockSpec((TH, h), lambda n, t: (t, 0)))
        args.extend((f, rw, rh))
    in_specs.append(pl.BlockSpec(memory_space=pltpu.MemorySpace.SMEM))
    args.append(cb_const)

    return pl.pallas_call(
        _hnn_fused_kernel,
        out_shape=jax.ShapeDtypeStruct((N, H, W), jnp.float32),
        grid=(N, H // TH),
        in_specs=in_specs,
        out_specs=pl.BlockSpec((1, TH, W), lambda n, t: (n, t, 0)),
        compiler_params=pltpu.CompilerParams(
            dimension_semantics=("parallel", "parallel"),
            vmem_limit_bytes=48 * 1024 * 1024),
    )(*args)


# --------------------------------------------------------------------------
# Glue (plain JAX / numpy)
# --------------------------------------------------------------------------
@functools.lru_cache(maxsize=None)
def bilinear_matrix_np(out_size, in_size):
    """PyTorch nn.Upsample(mode='bilinear', align_corners=False) as a matrix."""
    scale = in_size / out_size
    o = np.arange(out_size, dtype=np.float64)
    src = np.maximum((o + 0.5) * scale - 0.5, 0.0)
    x0 = np.minimum(np.floor(src).astype(np.int64), in_size - 1)
    x1 = np.minimum(x0 + 1, in_size - 1)
    lam = src - x0
    R = np.zeros((out_size, in_size), dtype=np.float64)
    np.add.at(R, (np.arange(out_size), x0), 1.0 - lam)
    np.add.at(R, (np.arange(out_size), x1), lam)
    return R.astype(np.float32)


def synthetic_backbone(img_nhwc, bb_ws, bb_bs):
    """Deterministic stand-in backbone: 5 stages of avg-pool2 + 1x1 proj + relu."""
    feats = []
    x = img_nhwc
    for w, b in zip(bb_ws, bb_bs):
        n, h, ww, c = x.shape
        x = x.reshape(n, h // 2, 2, ww // 2, 2, c).mean(axis=(2, 4))
        x = jax.nn.relu(jnp.einsum('nhwc,co->nhwo', x, w) + b)
        feats.append(x)
    return feats


def init_params(key, in_ch=3, channels=tuple(HNN_BLOCK_OUT_CHANNEL)):
    params = {'bb_w': [], 'bb_b': [], 'aggre_w': [], 'aggre_b': []}
    c_prev = in_ch
    for c in channels:  # synthetic backbone projections
        key, k1, k2 = jax.random.split(key, 3)
        bound = 1.0 / np.sqrt(c_prev)
        params['bb_w'].append(
            jax.random.uniform(k1, (c_prev, c), jnp.float32, -bound, bound))
        params['bb_b'].append(
            jax.random.uniform(k2, (c,), jnp.float32, -bound, bound))
        c_prev = c
    for c in channels:  # aggre_conv_list: Conv2d(c, 1, 1) -> weight (1,c), bias (1,)
        key, k1, k2 = jax.random.split(key, 3)
        bound = 1.0 / np.sqrt(c)
        params['aggre_w'].append(
            jax.random.uniform(k1, (1, c), jnp.float32, -bound, bound))
        params['aggre_b'].append(
            jax.random.uniform(k2, (1,), jnp.float32, -bound, bound))
    # netCombine: Conv2d(5, 1, 1) -> weight (5,), bias (1,)
    key, k1, k2 = jax.random.split(key, 3)
    bound = 1.0 / np.sqrt(5.0)
    params['comb_w'] = jax.random.uniform(k1, (5,), jnp.float32, -bound, bound)
    params['comb_b'] = jax.random.uniform(k2, (1,), jnp.float32, -bound, bound)
    return params


def hnn_forward(img_nchw, params, compute_dtype=jnp.float32):
    """Equivalent of HNN.forward; returns {'prob_map': (N, 1, H, W)}.

    compute_dtype=jnp.bfloat16 halves HBM/VMEM traffic for the big operands
    (f32 accumulation is kept inside the kernel); default stays f32 to match
    the PyTorch reference exactly.
    """
    img = jnp.transpose(img_nchw, (0, 2, 3, 1)).astype(jnp.float32)  # -> NHWC
    N, H, W, _ = img.shape
    feats = synthetic_backbone(img, params['bb_w'], params['bb_b'])

    feats2d, rwtw_mats, rh_mats = [], [], []
    bias_acc = params['comb_b'][0]
    for i, f in enumerate(feats):
        n, h, w, c = f.shape
        rh = jnp.asarray(bilinear_matrix_np(H, h))        # (H, h), trace-time const
        rwt = jnp.asarray(bilinear_matrix_np(W, w).T)     # (w, W)
        wvec = params['aggre_w'][i][0]                    # (C,)
        cw_i = params['comb_w'][i]
        # Fold 1x1 aggre conv weights and the combine weight into the width
        # interpolation matrix:  RwtW[(w*C+c), W] = cw_i * wvec[c] * Rwt[w, W]
        rwtw = (wvec[None, :, None] * rwt[:, None, :]).reshape(w * c, W) * cw_i
        # Biases pass through the (row-sum = 1) bilinear upsample, so they fold
        # into a single scalar.
        bias_acc = bias_acc + cw_i * params['aggre_b'][i][0]
        feats2d.append(f.reshape(n, h, w * c).astype(compute_dtype))
        rwtw_mats.append(rwtw.astype(compute_dtype))
        rh_mats.append(rh.astype(compute_dtype))
    cb_const = bias_acc.reshape(1).astype(jnp.float32)

    prob = hnn_head(feats2d, rwtw_mats, rh_mats, cb_const, H, W)  # (N, H, W)
    return {'prob_map': prob[:, None, :, :]}                      # back to NCHW


def hnn_forward_reference(img_nchw, params):
    """Pure-JAX reference of the same forward pass (for validation)."""
    img = jnp.transpose(img_nchw, (0, 2, 3, 1)).astype(jnp.float32)
    N, H, W, _ = img.shape
    feats = synthetic_backbone(img, params['bb_w'], params['bb_b'])
    total = 0.0
    for i, f in enumerate(feats):
        n, h, w, c = f.shape
        rh = jnp.asarray(bilinear_matrix_np(H, h))
        rwt = jnp.asarray(bilinear_matrix_np(W, w).T)
        y = (jnp.einsum('nhwc,c->nhw', f, params['aggre_w'][i][0])
             + params['aggre_b'][i][0])
        up = jnp.einsum('Hh,nhw,wW->nHW', rh, y, rwt)
        total = total + params['comb_w'][i] * up
    prob = jax.nn.sigmoid(total + params['comb_b'][0])
    return prob[:, None, :, :]


# --------------------------------------------------------------------------
if __name__ == "__main__":
    key = jax.random.PRNGKey(0)
    pkey, ikey = jax.random.split(key)
    params = init_params(pkey)
    img = jax.random.normal(ikey, (2, 3, 64, 64), dtype=jnp.float32)  # NCHW

    out = jax.jit(hnn_forward)(img, params)
    prob_map = jax.block_until_ready(out['prob_map'])

    assert prob_map.shape == (2, 1, 64, 64), prob_map.shape
    assert prob_map.dtype == jnp.float32
    assert bool(jnp.all(jnp.isfinite(prob_map)))
    assert bool(jnp.all((prob_map >= 0.0) & (prob_map <= 1.0)))

    ref = jax.block_until_ready(jax.jit(hnn_forward_reference)(img, params))
    max_err = float(jnp.max(jnp.abs(prob_map - ref)))
    assert max_err < 2e-2, f"max abs error vs reference: {max_err}"

    print("KERNEL_OK")
</pallas_src>

<mosaic_0001>
module attributes {stable_mosaic.version = 11 : i64} {
  func.func @_hnn_fused_kernel(%arg0: i32, %arg1: i32, %arg2: memref<1x32x256xf32, #tpu.memory_space<vmem>>, %arg3: memref<256x64xf32, #tpu.memory_space<vmem>>, %arg4: memref<64x32xf32, #tpu.memory_space<vmem>>, %arg5: memref<1x16x256xf32, #tpu.memory_space<vmem>>, %arg6: memref<256x64xf32, #tpu.memory_space<vmem>>, %arg7: memref<64x16xf32, #tpu.memory_space<vmem>>, %arg8: memref<1x8x256xf32, #tpu.memory_space<vmem>>, %arg9: memref<256x64xf32, #tpu.memory_space<vmem>>, %arg10: memref<64x8xf32, #tpu.memory_space<vmem>>, %arg11: memref<1x4x256xf32, #tpu.memory_space<vmem>>, %arg12: memref<256x64xf32, #tpu.memory_space<vmem>>, %arg13: memref<64x4xf32, #tpu.memory_space<vmem>>, %arg14: memref<1x2x128xf32, #tpu.memory_space<vmem>>, %arg15: memref<128x64xf32, #tpu.memory_space<vmem>>, %arg16: memref<64x2xf32, #tpu.memory_space<vmem>>, %arg17: memref<1xf32, #tpu.memory_space<smem>>, %arg18: memref<1x64x64xf32, #tpu.memory_space<vmem>>) attributes {dimension_semantics = [#tpu.dimension_semantics<parallel>, #tpu.dimension_semantics<parallel>], iteration_bounds = array<i64: 2, 1>, scalar_prefetch = 0 : i64, scratch_operands = 0 : i64, tpu.core_type = #tpu.core_type<tc>, window_params = [{transform_indices = @transform_0, window_bounds = array<i64: 1, 32, 256>}, {pipeline_mode = #tpu.pipeline_mode<synchronous>, transform_indices = @transform_1, window_bounds = array<i64: 256, 64>}, {transform_indices = @transform_2, window_bounds = array<i64: 64, 32>}, {transform_indices = @transform_3, window_bounds = array<i64: 1, 16, 256>}, {pipeline_mode = #tpu.pipeline_mode<synchronous>, transform_indices = @transform_4, window_bounds = array<i64: 256, 64>}, {transform_indices = @transform_5, window_bounds = array<i64: 64, 16>}, {transform_indices = @transform_6, window_bounds = array<i64: 1, 8, 256>}, {pipeline_mode = #tpu.pipeline_mode<synchronous>, transform_indices = @transform_7, window_bounds = array<i64: 256, 64>}, {transform_indices = @transform_8, window_bounds = array<i64: 64, 8>}, {transform_indices = @transform_9, window_bounds = array<i64: 1, 4, 256>}, {pipeline_mode = #tpu.pipeline_mode<synchronous>, transform_indices = @transform_10, window_bounds = array<i64: 256, 64>}, {transform_indices = @transform_11, window_bounds = array<i64: 64, 4>}, {transform_indices = @transform_12, window_bounds = array<i64: 1, 2, 128>}, {pipeline_mode = #tpu.pipeline_mode<synchronous>, transform_indices = @transform_13, window_bounds = array<i64: 128, 64>}, {transform_indices = @transform_14, window_bounds = array<i64: 64, 2>}, {transform_indices = @transform_15, window_bounds = array<i64: 1>}, {transform_indices = @transform_16, window_bounds = array<i64: 1, 64, 64>}]} {
    %c0 = arith.constant 0 : index
    %c0_0 = arith.constant 0 : index
    %c0_1 = arith.constant 0 : index
    %0 = vector.load %arg2[%c0, %c0_0, %c0_1] : memref<1x32x256xf32, #tpu.memory_space<vmem>>, vector<1x32x256xf32>
    %1 = vector.shape_cast %0 : vector<1x32x256xf32> to vector<32x256xf32>
    %c0_2 = arith.constant 0 : index
    %c0_3 = arith.constant 0 : index
    %2 = vector.load %arg3[%c0_2, %c0_3] : memref<256x64xf32, #tpu.memory_space<vmem>>, vector<256x64xf32>
    %cst = arith.constant dense<0.000000e+00> : vector<32x64xf32>
    %3 = tpu.matmul %1, %2, %cst {dimension_numbers = #tpu.dot_dimension_numbers<[1], [0], [0], [1], [0, 0, 1, 1], [], []>} : vector<32x256xf32>, vector<256x64xf32>, vector<32x64xf32> -> vector<32x64xf32>
    %c0_4 = arith.constant 0 : index
    %c0_5 = arith.constant 0 : index
    %4 = vector.load %arg4[%c0_4, %c0_5] : memref<64x32xf32, #tpu.memory_space<vmem>>, vector<64x32xf32>
    %cst_6 = arith.constant dense<0.000000e+00> : vector<64x64xf32>
    %5 = tpu.matmul %4, %3, %cst_6 {dimension_numbers = #tpu.dot_dimension_numbers<[1], [0], [0], [1], [0, 0, 1, 1], [], []>} : vector<64x32xf32>, vector<32x64xf32>, vector<64x64xf32> -> vector<64x64xf32>
    %c0_7 = arith.constant 0 : index
    %c0_8 = arith.constant 0 : index
    %c0_9 = arith.constant 0 : index
    %6 = vector.load %arg5[%c0_7, %c0_8, %c0_9] : memref<1x16x256xf32, #tpu.memory_space<vmem>>, vector<1x16x256xf32>
    %7 = vector.shape_cast %6 : vector<1x16x256xf32> to vector<16x256xf32>
    %c0_10 = arith.constant 0 : index
    %c0_11 = arith.constant 0 : index
    %8 = vector.load %arg6[%c0_10, %c0_11] : memref<256x64xf32, #tpu.memory_space<vmem>>, vector<256x64xf32>
    %cst_12 = arith.constant dense<0.000000e+00> : vector<16x64xf32>
    %9 = tpu.matmul %7, %8, %cst_12 {dimension_numbers = #tpu.dot_dimension_numbers<[1], [0], [0], [1], [0, 0, 1, 1], [], []>} : vector<16x256xf32>, vector<256x64xf32>, vector<16x64xf32> -> vector<16x64xf32>
    %c0_13 = arith.constant 0 : index
    %c0_14 = arith.constant 0 : index
    %10 = vector.load %arg7[%c0_13, %c0_14] : memref<64x16xf32, #tpu.memory_space<vmem>>, vector<64x16xf32>
    %cst_15 = arith.constant dense<0.000000e+00> : vector<64x64xf32>
    %11 = tpu.matmul %10, %9, %cst_15 {dimension_numbers = #tpu.dot_dimension_numbers<[1], [0], [0], [1], [0, 0, 1, 1], [], []>} : vector<64x16xf32>, vector<16x64xf32>, vector<64x64xf32> -> vector<64x64xf32>
    %12 = arith.addf %5, %11 : vector<64x64xf32>
    %c0_16 = arith.constant 0 : index
    %c0_17 = arith.constant 0 : index
    %c0_18 = arith.constant 0 : index
    %13 = vector.load %arg8[%c0_16, %c0_17, %c0_18] : memref<1x8x256xf32, #tpu.memory_space<vmem>>, vector<1x8x256xf32>
    %14 = vector.shape_cast %13 : vector<1x8x256xf32> to vector<8x256xf32>
    %c0_19 = arith.constant 0 : index
    %c0_20 = arith.constant 0 : index
    %15 = vector.load %arg9[%c0_19, %c0_20] : memref<256x64xf32, #tpu.memory_space<vmem>>, vector<256x64xf32>
    %cst_21 = arith.constant dense<0.000000e+00> : vector<8x64xf32>
    %16 = tpu.matmul %14, %15, %cst_21 {dimension_numbers = #tpu.dot_dimension_numbers<[1], [0], [0], [1], [0, 0, 1, 1], [], []>} : vector<8x256xf32>, vector<256x64xf32>, vector<8x64xf32> -> vector<8x64xf32>
    %c0_22 = arith.constant 0 : index
    %c0_23 = arith.constant 0 : index
    %17 = vector.load %arg10[%c0_22, %c0_23] : memref<64x8xf32, #tpu.memory_space<vmem>>, vector<64x8xf32>
    %cst_24 = arith.constant dense<0.000000e+00> : vector<64x64xf32>
    %18 = tpu.matmul %17, %16, %cst_24 {dimension_numbers = #tpu.dot_dimension_numbers<[1], [0], [0], [1], [0, 0, 1, 1], [], []>} : vector<64x8xf32>, vector<8x64xf32>, vector<64x64xf32> -> vector<64x64xf32>
    %19 = arith.addf %12, %18 : vector<64x64xf32>
    %c0_25 = arith.constant 0 : index
    %c0_26 = arith.constant 0 : index
    %c0_27 = arith.constant 0 : index
    %20 = vector.load %arg11[%c0_25, %c0_26, %c0_27] : memref<1x4x256xf32, #tpu.memory_space<vmem>>, vector<1x4x256xf32>
    %21 = vector.shape_cast %20 : vector<1x4x256xf32> to vector<4x256xf32>
    %c0_28 = arith.constant 0 : index
    %c0_29 = arith.constant 0 : index
    %22 = vector.load %arg12[%c0_28, %c0_29] : memref<256x64xf32, #tpu.memory_space<vmem>>, vector<256x64xf32>
    %cst_30 = arith.constant dense<0.000000e+00> : vector<4x64xf32>
    %23 = tpu.matmul %21, %22, %cst_30 {dimension_numbers = #tpu.dot_dimension_numbers<[1], [0], [0], [1], [0, 0, 1, 1], [], []>} : vector<4x256xf32>, vector<256x64xf32>, vector<4x64xf32> -> vector<4x64xf32>
    %c0_31 = arith.constant 0 : index
    %c0_32 = arith.constant 0 : index
    %24 = vector.load %arg13[%c0_31, %c0_32] : memref<64x4xf32, #tpu.memory_space<vmem>>, vector<64x4xf32>
    %cst_33 = arith.constant dense<0.000000e+00> : vector<64x64xf32>
    %25 = tpu.matmul %24, %23, %cst_33 {dimension_numbers = #tpu.dot_dimension_numbers<[1], [0], [0], [1], [0, 0, 1, 1], [], []>} : vector<64x4xf32>, vector<4x64xf32>, vector<64x64xf32> -> vector<64x64xf32>
    %26 = arith.addf %19, %25 : vector<64x64xf32>
    %c0_34 = arith.constant 0 : index
    %c0_35 = arith.constant 0 : index
    %c0_36 = arith.constant 0 : index
    %27 = vector.load %arg14[%c0_34, %c0_35, %c0_36] : memref<1x2x128xf32, #tpu.memory_space<vmem>>, vector<1x2x128xf32>
    %28 = vector.shape_cast %27 : vector<1x2x128xf32> to vector<2x128xf32>
    %c0_37 = arith.constant 0 : index
    %c0_38 = arith.constant 0 : index
    %29 = vector.load %arg15[%c0_37, %c0_38] : memref<128x64xf32, #tpu.memory_space<vmem>>, vector<128x64xf32>
    %cst_39 = arith.constant dense<0.000000e+00> : vector<2x64xf32>
    %30 = tpu.matmul %28, %29, %cst_39 {dimension_numbers = #tpu.dot_dimension_numbers<[1], [0], [0], [1], [0, 0, 1, 1], [], []>} : vector<2x128xf32>, vector<128x64xf32>, vector<2x64xf32> -> vector<2x64xf32>
    %c0_40 = arith.constant 0 : index
    %c0_41 = arith.constant 0 : index
    %31 = vector.load %arg16[%c0_40, %c0_41] : memref<64x2xf32, #tpu.memory_space<vmem>>, vector<64x2xf32>
    %cst_42 = arith.constant dense<0.000000e+00> : vector<64x64xf32>
    %32 = tpu.matmul %31, %30, %cst_42 {dimension_numbers = #tpu.dot_dimension_numbers<[1], [0], [0], [1], [0, 0, 1, 1], [], []>} : vector<64x2xf32>, vector<2x64xf32>, vector<64x64xf32> -> vector<64x64xf32>
    %33 = arith.addf %26, %32 : vector<64x64xf32>
    %c0_43 = arith.constant 0 : index
    %34 = memref.load %arg17[%c0_43] : memref<1xf32, #tpu.memory_space<smem>>
    %35 = vector.broadcast %34 : f32 to vector<64x64xf32>
    %36 = arith.addf %33, %35 : vector<64x64xf32>
    %37 = arith.negf %36 : vector<64x64xf32>
    %38 = math.exp %37 : vector<64x64xf32>
    %cst_44 = arith.constant 1.000000e+00 : f32
    %39 = vector.broadcast %cst_44 : f32 to vector<64x64xf32>
    %40 = arith.addf %39, %38 : vector<64x64xf32>
    %41 = arith.divf %39, %40 : vector<64x64xf32>
    %c0_45 = arith.constant 0 : index
    %c0_46 = arith.constant 0 : index
    %c0_47 = arith.constant 0 : index
    %42 = vector.load %arg18[%c0_45, %c0_46, %c0_47] : memref<1x64x64xf32, #tpu.memory_space<vmem>>, vector<1x64x64xf32>
    %43 = vector.shape_cast %42 : vector<1x64x64xf32> to vector<64x64xf32>
    %44 = vector.shape_cast %41 : vector<64x64xf32> to vector<1x64x64xf32>
    tpu.vector_store %arg18[%c0_45, %c0_46, %c0_47], %44 {strides = array<i32>} : memref<1x64x64xf32, #tpu.memory_space<vmem>>, vector<1x64x64xf32>,
    return
  }
  func.func @transform_0(%arg0: i32, %arg1: i32) -> (i32, i32, i32) {
    %c0_i32 = arith.constant 0 : i32
    %c0_i32_0 = arith.constant 0 : i32
    %c0_i32_1 = arith.constant 0 : i32
    return %arg0, %c0_i32, %c0_i32_0 : i32, i32, i32
  }
  func.func @transform_1(%arg0: i32, %arg1: i32) -> (i32, i32) {
    %c0_i32 = arith.constant 0 : i32
    %c0_i32_0 = arith.constant 0 : i32
    %c0_i32_1 = arith.constant 0 : i32
    return %c0_i32, %c0_i32_0 : i32, i32
  }
  func.func @transform_2(%arg0: i32, %arg1: i32) -> (i32, i32) {
    %c0_i32 = arith.constant 0 : i32
    %c0_i32_0 = arith.constant 0 : i32
    return %arg1, %c0_i32 : i32, i32
  }
  func.func @transform_3(%arg0: i32, %arg1: i32) -> (i32, i32, i32) {
    %c0_i32 = arith.constant 0 : i32
    %c0_i32_0 = arith.constant 0 : i32
    %c0_i32_1 = arith.constant 0 : i32
    return %arg0, %c0_i32, %c0_i32_0 : i32, i32, i32
  }
  func.func @transform_4(%arg0: i32, %arg1: i32) -> (i32, i32) {
    %c0_i32 = arith.constant 0 : i32
    %c0_i32_0 = arith.constant 0 : i32
    %c0_i32_1 = arith.constant 0 : i32
    return %c0_i32, %c0_i32_0 : i32, i32
  }
  func.func @transform_5(%arg0: i32, %arg1: i32) -> (i32, i32) {
    %c0_i32 = arith.constant 0 : i32
    %c0_i32_0 = arith.constant 0 : i32
    return %arg1, %c0_i32 : i32, i32
  }
  func.func @transform_6(%arg0: i32, %arg1: i32) -> (i32, i32, i32) {
    %c0_i32 = arith.constant 0 : i32
    %c0_i32_0 = arith.constant 0 : i32
    %c0_i32_1 = arith.constant 0 : i32
    return %arg0, %c0_i32, %c0_i32_0 : i32, i32, i32
  }
  func.func @transform_7(%arg0: i32, %arg1: i32) -> (i32, i32) {
    %c0_i32 = arith.constant 0 : i32
    %c0_i32_0 = arith.constant 0 : i32
    %c0_i32_1 = arith.constant 0 : i32
    return %c0_i32, %c0_i32_0 : i32, i32
  }
  func.func @transform_8(%arg0: i32, %arg1: i32) -> (i32, i32) {
    %c0_i32 = arith.constant 0 : i32
    %c0_i32_0 = arith.constant 0 : i32
    return %arg1, %c0_i32 : i32, i32
  }
  func.func @transform_9(%arg0: i32, %arg1: i32) -> (i32, i32, i32) {
    %c0_i32 = arith.constant 0 : i32
    %c0_i32_0 = arith.constant 0 : i32
    %c0_i32_1 = arith.constant 0 : i32
    return %arg0, %c0_i32, %c0_i32_0 : i32, i32, i32
  }
  func.func @transform_10(%arg0: i32, %arg1: i32) -> (i32, i32) {
    %c0_i32 = arith.constant 0 : i32
    %c0_i32_0 = arith.constant 0 : i32
    %c0_i32_1 = arith.constant 0 : i32
    return %c0_i32, %c0_i32_0 : i32, i32
  }
  func.func @transform_11(%arg0: i32, %arg1: i32) -> (i32, i32) {
    %c0_i32 = arith.constant 0 : i32
    %c0_i32_0 = arith.constant 0 : i32
    return %arg1, %c0_i32 : i32, i32
  }
  func.func @transform_12(%arg0: i32, %arg1: i32) -> (i32, i32, i32) {
    %c0_i32 = arith.constant 0 : i32
    %c0_i32_0 = arith.constant 0 : i32
    %c0_i32_1 = arith.constant 0 : i32
    return %arg0, %c0_i32, %c0_i32_0 : i32, i32, i32
  }
  func.func @transform_13(%arg0: i32, %arg1: i32) -> (i32, i32) {
    %c0_i32 = arith.constant 0 : i32
    %c0_i32_0 = arith.constant 0 : i32
    %c0_i32_1 = arith.constant 0 : i32
    return %c0_i32, %c0_i32_0 : i32, i32
  }
  func.func @transform_14(%arg0: i32, %arg1: i32) -> (i32, i32) {
    %c0_i32 = arith.constant 0 : i32
    %c0_i32_0 = arith.constant 0 : i32
    return %arg1, %c0_i32 : i32, i32
  }
  func.func @transform_15(%arg0: i32, %arg1: i32) -> i32 {
    %c0_i32 = arith.constant 0 : i32
    %c0_i32_0 = arith.constant 0 : i32
    return %c0_i32 : i32
  }
  func.func @transform_16(%arg0: i32, %arg1: i32) -> (i32, i32, i32) {
    %c0_i32 = arith.constant 0 : i32
    %c0_i32_0 = arith.constant 0 : i32
    return %arg0, %arg1, %c0_i32 : i32, i32, i32
  }
}

</mosaic_0001>

<llo_original>
// kernel: hnn_forward.1
$region0: #{hnn_forward.1}
  #allocation0 [shape = 'u32[]', space=smem, size = 0x4, offset = 0x4, fixed_abs, tag = 'smem constant byte address 0x4 - core index']
  #allocation1 [shape = 'u32[144,128]{1,0:T(1,128)}', space=vmem, size = 0x12000, scoped, tag = 'internal scratch']
  #allocation2 [shape = 'f32[1]{0:T(128)S(6)}', space=smem, size = 0x200, scoped, tag = 'scoped memory for hnn_forward.1']
  %s0 = inlined_call_operand.vmem [shape: f32[2,32,256], index: 0, kind: input, shape index: {}]
  %s1 = inlined_call_operand.vmem [shape: f32[256,64], index: 1, kind: input, shape index: {}]
  %s2 = inlined_call_operand.vmem [shape: f32[64,32], index: 2, kind: input, shape index: {}]
  %s3 = inlined_call_operand.vmem [shape: f32[2,16,256], index: 3, kind: input, shape index: {}]
  %s4 = inlined_call_operand.vmem [shape: f32[256,64], index: 4, kind: input, shape index: {}]
  %s5 = inlined_call_operand.vmem [shape: f32[64,16], index: 5, kind: input, shape index: {}]
  %s6 = inlined_call_operand.vmem [shape: f32[2,8,256], index: 6, kind: input, shape index: {}]
  %s7 = inlined_call_operand.vmem [shape: f32[256,64], index: 7, kind: input, shape index: {}]
  %s8 = inlined_call_operand.vmem [shape: f32[64,8], index: 8, kind: input, shape index: {}]
  %s9 = inlined_call_operand.vmem [shape: f32[2,4,256], index: 9, kind: input, shape index: {}]
  %s10 = inlined_call_operand.vmem [shape: f32[256,64], index: 10, kind: input, shape index: {}]
  %s11 = inlined_call_operand.vmem [shape: f32[64,4], index: 11, kind: input, shape index: {}]
  %s12 = inlined_call_operand.vmem [shape: f32[2,2,128], index: 12, kind: input, shape index: {}]
  %s13 = inlined_call_operand.vmem [shape: f32[128,64], index: 13, kind: input, shape index: {}]
  %s14 = inlined_call_operand.vmem [shape: f32[64,2], index: 14, kind: input, shape index: {}]
  %s15 = inlined_call_operand.<no memory space> [shape: f32[1], index: 15, kind: input, shape index: {}]
  %s16 = inlined_call_operand.hbm [shape: f32[2,64,64], index: 16, kind: output, shape index: {}]
  %s17 = sld [smem:[#allocation0]]
  $region97: #{hnn_forward.1} parent=0
    _
  %s19 = ssub.s32 1, %s17
  %s20 = scalar_select 0, %s19, %s17
  %21 = sst [smem:[#allocation2]] %s15
  $region1: #{hnn_forward.1} parent=0
    #allocation3 [shape = 'u8[65536]{0}', space=vmem, size = 0x10000, scoped, tag = 'output window, operand 0']
    #allocation4 [shape = 's32[2]{0}', space=sflag, size = 0x8, scoped, tag = 'scoped memory for hnn_forward.1']
    %22 = vsyncpa [#allocation4], 0
    %s23 = scalar_lea.sflag [#allocation4], 1
    %24 = vsyncpa %s23, 0
    loop: start=0, step=1, limit=4
    $region2: #{hnn_forward.1} parent=1 // loop_pre_header
      _
    $region3: #{hnn_forward.1} parent=1 // loop_header
      %s26 = sphi 0, %s30
      %p27 = scmp.ge.s32.totalorder %s26, 4
      %s33 = sphi 0, %s45
      %s34 = sphi 0, %s41
      %s35 = sphi 0, %s33
      %s36 = sphi 0, %s34
      %s37 = sphi 0, %s35
      %s38 = sphi 0, %s36
      %s48 = sphi 0, %s50
      %s51 = sphi 0, %s48
      %s52 = sphi 0, %s51
      %s68 = sphi 0, %s52
      %s72 = sphi 0, %s72
      %s74 = sphi 0, %s72
      %s75 = sphi 0, %s74
      %s89 = sphi 0, %s75
      %s95 = sphi 0, %s97
      %s98 = sphi 0, %s95
      %s99 = sphi 0, %s98
      %s115 = sphi 0, %s99
      %s121 = sphi 0, %s123
      %s124 = sphi 0, %s121
      %s125 = sphi 0, %s124
      %s141 = sphi 0, %s125
      %s145 = sphi 0, %s145
      %s147 = sphi 0, %s145
      %s148 = sphi 0, %s147
      %s162 = sphi 0, %s148
      %s168 = sphi 0, %s170
      %s171 = sphi 0, %s168
      %s172 = sphi 0, %s171
      %s188 = sphi 0, %s172
      %s194 = sphi 0, %s196
      %s197 = sphi 0, %s194
      %s198 = sphi 0, %s197
      %s214 = sphi 0, %s198
      %s218 = sphi 0, %s218
      %s220 = sphi 0, %s218
      %s221 = sphi 0, %s220
      %s235 = sphi 0, %s221
      %s241 = sphi 0, %s243
      %s244 = sphi 0, %s241
      %s245 = sphi 0, %s244
      %s261 = sphi 0, %s245
      %s267 = sphi 0, %s269
      %s270 = sphi 0, %s267
      %s271 = sphi 0, %s270
      %s287 = sphi 0, %s271
      %s291 = sphi 0, %s291
      %s293 = sphi 0, %s291
      %s294 = sphi 0, %s293
      %s308 = sphi 0, %s294
      %s314 = sphi 0, %s316
      %s317 = sphi 0, %s314
      %s318 = sphi 0, %s317
      %s334 = sphi 0, %s318
      %s340 = sphi 0, %s342
      %s343 = sphi 0, %s340
      %s344 = sphi 0, %s343
      %s360 = sphi 0, %s344
      %s364 = sphi 0, %s364
      %s366 = sphi 0, %s364
      %s367 = sphi 0, %s366
      %s381 = sphi 0, %s367
      %s387 = sphi 0, %s389
      %s390 = sphi 0, %s387
      %s391 = sphi 0, %s390
      %s407 = sphi 0, %s391
      %s411 = sphi 0, %s411
      %s413 = sphi 0, %s411
      %s414 = sphi 0, %s413
      %s428 = sphi 0, %s414
      %s436 = sphi 0, %s438
      %s439 = sphi 0, %s436
      %s440 = sphi 0, %s439
      %s456 = sphi 0, %s440
    $region4: #{hnn_forward.1} parent=1 // loop_header_branch
      %29 = sbr.rel (%p27) target = $region8
    $region5: #{hnn_forward.1} parent=1 // loop_body
      %s31 = ssub.s32 %s26, 1
      %s32 = ssub.s32 %s26, 2
      %s39 = sadd.s32 1, %s34
      %p40 = scmp.ge.s32.totalorder %s39, 1
      %s41 = scalar_select %p40, 0, %s39
      %s42 = sadd.s32 1, %s33
      %s43 = scalar_select %p40, %s42, %s33
      %p44 = scmp.ge.s32.totalorder %s43, 2
      %s45 = scalar_select %p44, 0, %s43
      %s46 = ssub.s32 %s33, %s45
      %p47 = scmp.eq.s32.totalorder %s46, 0
      %s49 = sadd.s32 %s48, 1
      %s50 = scalar_select %p47, %s48, %s49
      %p53 = pneg %p47
      %p54 = scmp.eq.s32.totalorder %s26, 1
      %p55 = por %p53, %p54
      %p56 = scmp.ne.s32.totalorder %s48, %s51
      %p57 = scmp.eq.s32.totalorder %s26, 0
      %p58 = por %p56, %p57
      %p59 = scmp.ne.s32.totalorder %s48, %s51
      %p60 = scmp.eq.s32.totalorder %s31, 1
      %p61 = por %p59, %p60
      %p62 = scmp.ne.s32.totalorder %s51, %s52
      %p63 = scmp.eq.s32.totalorder %s31, 0
      %p64 = por %p62, %p63
      %p65 = scmp.ne.s32.totalorder %s51, %s52
      %p66 = scmp.eq.s32.totalorder %s32, 1
      %p67 = por %p65, %p66
      %p69 = scmp.ne.s32.totalorder %s52, %s68
      %p70 = scmp.eq.s32.totalorder %s32, 0
      %p71 = por %p69, %p70
      %s73 = sadd.s32 %s72, 1
      %p76 = scmp.eq.s32.totalorder %s26, 1
      %p77 = scmp.ne.s32.totalorder %s72, %s74
      %p78 = scmp.eq.s32.totalorder %s26, 0
      %p79 = por %p77, %p78
      %p80 = scmp.ne.s32.totalorder %s72, %s74
      %p81 = scmp.eq.s32.totalorder %s31, 1
      %p82 = por %p80, %p81
      %p83 = scmp.ne.s32.totalorder %s74, %s75
      %p84 = scmp.eq.s32.totalorder %s31, 0
      %p85 = por %p83, %p84
      %p86 = scmp.ne.s32.totalorder %s74, %s75
      %p87 = scmp.eq.s32.totalorder %s32, 1
      %p88 = por %p86, %p87
      %p90 = scmp.ne.s32.totalorder %s75, %s89
      %p91 = scmp.eq.s32.totalorder %s32, 0
      %p92 = por %p90, %p91
      %s93 = ssub.s32 %s34, %s41
      %p94 = scmp.eq.s32.totalorder %s93, 0
      %s96 = sadd.s32 %s95, 1
      %s97 = scalar_select %p94, %s95, %s96
      %p100 = pneg %p94
      %p101 = scmp.eq.s32.totalorder %s26, 1
      %p102 = por %p100, %p101
      %p103 = scmp.ne.s32.totalorder %s95, %s98
      %p104 = scmp.eq.s32.totalorder %s26, 0
      %p105 = por %p103, %p104
      %p106 = scmp.ne.s32.totalorder %s95, %s98
      %p107 = scmp.eq.s32.totalorder %s31, 1
      %p108 = por %p106, %p107
      %p109 = scmp.ne.s32.totalorder %s98, %s99
      %p110 = scmp.eq.s32.totalorder %s31, 0
      %p111 = por %p109, %p110
      %p112 = scmp.ne.s32.totalorder %s98, %s99
      %p113 = scmp.eq.s32.totalorder %s32, 1
      %p114 = por %p112, %p113
      %p116 = scmp.ne.s32.totalorder %s99, %s115
      %p117 = scmp.eq.s32.totalorder %s32, 0
      %p118 = por %p116, %p117
      %s119 = ssub.s32 %s33, %s45
      %p120 = scmp.eq.s32.totalorder %s119, 0
      %s122 = sadd.s32 %s121, 1
      %s123 = scalar_select %p120, %s121, %s122
      %p126 = pneg %p120
      %p127 = scmp.eq.s32.totalorder %s26, 1
      %p128 = por %p126, %p127
      %p129 = scmp.ne.s32.totalorder %s121, %s124
      %p130 = scmp.eq.s32.totalorder %s26, 0
      %p131 = por %p129, %p130
      %p132 = scmp.ne.s32.totalorder %s121, %s124
      %p133 = scmp.eq.s32.totalorder %s31, 1
      %p134 = por %p132, %p133
      %p135 = scmp.ne.s32.totalorder %s124, %s125
      %p136 = scmp.eq.s32.totalorder %s31, 0
      %p137 = por %p135, %p136
      %p138 = scmp.ne.s32.totalorder %s124, %s125
      %p139 = scmp.eq.s32.totalorder %s32, 1
      %p140 = por %p138, %p139
      %p142 = scmp.ne.s32.totalorder %s125, %s141
      %p143 = scmp.eq.s32.totalorder %s32, 0
      %p144 = por %p142, %p143
      %s146 = sadd.s32 %s145, 1
      %p149 = scmp.eq.s32.totalorder %s26, 1
      %p150 = scmp.ne.s32.totalorder %s145, %s147
      %p151 = scmp.eq.s32.totalorder %s26, 0
      %p152 = por %p150, %p151
      %p153 = scmp.ne.s32.totalorder %s145, %s147
      %p154 = scmp.eq.s32.totalorder %s31, 1
      %p155 = por %p153, %p154
      %p156 = scmp.ne.s32.totalorder %s147, %s148
      %p157 = scmp.eq.s32.totalorder %s31, 0
      %p158 = por %p156, %p157
      %p159 = scmp.ne.s32.totalorder %s147, %s148
      %p160 = scmp.eq.s32.totalorder %s32, 1
      %p161 = por %p159, %p160
      %p163 = scmp.ne.s32.totalorder %s148, %s162
      %p164 = scmp.eq.s32.totalorder %s32, 0
      %p165 = por %p163, %p164
      %s166 = ssub.s32 %s34, %s41
      %p167 = scmp.eq.s32.totalorder %s166, 0
      %s169 = sadd.s32 %s168, 1
      %s170 = scalar_select %p167, %s168, %s169
      %p173 = pneg %p167
      %p174 = scmp.eq.s32.totalorder %s26, 1
      %p175 = por %p173, %p174
      %p176 = scmp.ne.s32.totalorder %s168, %s171
      %p177 = scmp.eq.s32.totalorder %s26, 0
      %p178 = por %p176, %p177
      %p179 = scmp.ne.s32.totalorder %s168, %s171
      %p180 = scmp.eq.s32.totalorder %s31, 1
      %p181 = por %p179, %p180
      %p182 = scmp.ne.s32.totalorder %s171, %s172
      %p183 = scmp.eq.s32.totalorder %s31, 0
      %p184 = por %p182, %p183
      %p185 = scmp.ne.s32.totalorder %s171, %s172
      %p186 = scmp.eq.s32.totalorder %s32, 1
      %p187 = por %p185, %p186
      %p189 = scmp.ne.s32.totalorder %s172, %s188
      %p190 = scmp.eq.s32.totalorder %s32, 0
      %p191 = por %p189, %p190
      %s192 = ssub.s32 %s33, %s45
      %p193 = scmp.eq.s32.totalorder %s192, 0
      %s195 = sadd.s32 %s194, 1
      %s196 = scalar_select %p193, %s194, %s195
      %p199 = pneg %p193
      %p200 = scmp.eq.s32.totalorder %s26, 1
      %p201 = por %p199, %p200
      %p202 = scmp.ne.s32.totalorder %s194, %s197
      %p203 = scmp.eq.s32.totalorder %s26, 0
      %p204 = por %p202, %p203
      %p205 = scmp.ne.s32.totalorder %s194, %s197
      %p206 = scmp.eq.s32.totalorder %s31, 1
      %p207 = por %p205, %p206
      %p208 = scmp.ne.s32.totalorder %s197, %s198
      %p209 = scmp.eq.s32.totalorder %s31, 0
      %p210 = por %p208, %p209
      %p211 = scmp.ne.s32.totalorder %s197, %s198
      %p212 = scmp.eq.s32.totalorder %s32, 1
      %p213 = por %p211, %p212
      %p215 = scmp.ne.s32.totalorder %s198, %s214
      %p216 = scmp.eq.s32.totalorder %s32, 0
      %p217 = por %p215, %p216
      %s219 = sadd.s32 %s218, 1
      %p222 = scmp.eq.s32.totalorder %s26, 1
      %p223 = scmp.ne.s32.totalorder %s218, %s220
      %p224 = scmp.eq.s32.totalorder %s26, 0
      %p225 = por %p223, %p224
      %p226 = scmp.ne.s32.totalorder %s218, %s220
      %p227 = scmp.eq.s32.totalorder %s31, 1
      %p228 = por %p226, %p227
      %p229 = scmp.ne.s32.totalorder %s220, %s221
      %p230 = scmp.eq.s32.totalorder %s31, 0
      %p231 = por %p229, %p230
      %p232 = scmp.ne.s32.totalorder %s220, %s221
      %p233 = scmp.eq.s32.totalorder %s32, 1
      %p234 = por %p232, %p233
      %p236 = scmp.ne.s32.totalorder %s221, %s235
      %p237 = scmp.eq.s32.totalorder %s32, 0
      %p238 = por %p236, %p237
      %s239 = ssub.s32 %s34, %s41
      %p240 = scmp.eq.s32.totalorder %s239, 0
      %s242 = sadd.s32 %s241, 1
      %s243 = scalar_select %p240, %s241, %s242
      %p246 = pneg %p240
      %p247 = scmp.eq.s32.totalorder %s26, 1
      %p248 = por %p246, %p247
      %p249 = scmp.ne.s32.totalorder %s241, %s244
      %p250 = scmp.eq.s32.totalorder %s26, 0
      %p251 = por %p249, %p250
      %p252 = scmp.ne.s32.totalorder %s241, %s244
      %p253 = scmp.eq.s32.totalorder %s31, 1
      %p254 = por %p252, %p253
      %p255 = scmp.ne.s32.totalorder %s244, %s245
      %p256 = scmp.eq.s32.totalorder %s31, 0
      %p257 = por %p255, %p256
      %p258 = scmp.ne.s32.totalorder %s244, %s245
      %p259 = scmp.eq.s32.totalorder %s32, 1
      %p260 = por %p258, %p259
      %p262 = scmp.ne.s32.totalorder %s245, %s261
      %p263 = scmp.eq.s32.totalorder %s32, 0
      %p264 = por %p262, %p263
      %s265 = ssub.s32 %s33, %s45
      %p266 = scmp.eq.s32.totalorder %s265, 0
      %s268 = sadd.s32 %s267, 1
      %s269 = scalar_select %p266, %s267, %s268
      %p272 = pneg %p266
      %p273 = scmp.eq.s32.totalorder %s26, 1
      %p274 = por %p272, %p273
      %p275 = scmp.ne.s32.totalorder %s267, %s270
      %p276 = scmp.eq.s32.totalorder %s26, 0
      %p277 = por %p275, %p276
      %p278 = scmp.ne.s32.totalorder %s267, %s270
      %p279 = scmp.eq.s32.totalorder %s31, 1
      %p280 = por %p278, %p279
      %p281 = scmp.ne.s32.totalorder %s270, %s271
      %p282 = scmp.eq.s32.totalorder %s31, 0
      %p283 = por %p281, %p282
      %p284 = scmp.ne.s32.totalorder %s270, %s271
      %p285 = scmp.eq.s32.totalorder %s32, 1
      %p286 = por %p284, %p285
      %p288 = scmp.ne.s32.totalorder %s271, %s287
      %p289 = scmp.eq.s32.totalorder %s32, 0
      %p290 = por %p288, %p289
      %s292 = sadd.s32 %s291, 1
      %p295 = scmp.eq.s32.totalorder %s26, 1
      %p296 = scmp.ne.s32.totalorder %s291, %s293
      %p297 = scmp.eq.s32.totalorder %s26, 0
      %p298 = por %p296, %p297
      %p299 = scmp.ne.s32.totalorder %s291, %s293
      %p300 = scmp.eq.s32.totalorder %s31, 1
      %p301 = por %p299, %p300
      %p302 = scmp.ne.s32.totalorder %s293, %s294
      %p303 = scmp.eq.s32.totalorder %s31, 0
      %p304 = por %p302, %p303
      %p305 = scmp.ne.s32.totalorder %s293, %s294
      %p306 = scmp.eq.s32.totalorder %s32, 1
      %p307 = por %p305, %p306
      %p309 = scmp.ne.s32.totalorder %s294, %s308
      %p310 = scmp.eq.s32.totalorder %s32, 0
      %p311 = por %p309, %p310
      %s312 = ssub.s32 %s34, %s41
      %p313 = scmp.eq.s32.totalorder %s312, 0
      %s315 = sadd.s32 %s314, 1
      %s316 = scalar_select %p313, %s314, %s315
      %p319 = pneg %p313
      %p320 = scmp.eq.s32.totalorder %s26, 1
      %p321 = por %p319, %p320
      %p322 = scmp.ne.s32.totalorder %s314, %s317
      %p323 = scmp.eq.s32.totalorder %s26, 0
      %p324 = por %p322, %p323
      %p325 = scmp.ne.s32.totalorder %s314, %s317
      %p326 = scmp.eq.s32.totalorder %s31, 1
      %p327 = por %p325, %p326
      %p328 = scmp.ne.s32.totalorder %s317, %s318
      %p329 = scmp.eq.s32.totalorder %s31, 0
      %p330 = por %p328, %p329
      %p331 = scmp.ne.s32.totalorder %s317, %s318
      %p332 = scmp.eq.s32.totalorder %s32, 1
      %p333 = por %p331, %p332
      %p335 = scmp.ne.s32.totalorder %s318, %s334
      %p336 = scmp.eq.s32.totalorder %s32, 0
      %p337 = por %p335, %p336
      %s338 = ssub.s32 %s33, %s45
      %p339 = scmp.eq.s32.totalorder %s338, 0
      %s341 = sadd.s32 %s340, 1
      %s342 = scalar_select %p339, %s340, %s341
      %p345 = pneg %p339
      %p346 = scmp.eq.s32.totalorder %s26, 1
      %p347 = por %p345, %p346
      %p348 = scmp.ne.s32.totalorder %s340, %s343
      %p349 = scmp.eq.s32.totalorder %s26, 0
      %p350 = por %p348, %p349
      %p351 = scmp.ne.s32.totalorder %s340, %s343
      %p352 = scmp.eq.s32.totalorder %s31, 1
      %p353 = por %p351, %p352
      %p354 = scmp.ne.s32.totalorder %s343, %s344
      %p355 = scmp.eq.s32.totalorder %s31, 0
      %p356 = por %p354, %p355
      %p357 = scmp.ne.s32.totalorder %s343, %s344
      %p358 = scmp.eq.s32.totalorder %s32, 1
      %p359 = por %p357, %p358
      %p361 = scmp.ne.s32.totalorder %s344, %s360
      %p362 = scmp.eq.s32.totalorder %s32, 0
      %p363 = por %p361, %p362
      %s365 = sadd.s32 %s364, 1
      %p368 = scmp.eq.s32.totalorder %s26, 1
      %p369 = scmp.ne.s32.totalorder %s364, %s366
      %p370 = scmp.eq.s32.totalorder %s26, 0
      %p371 = por %p369, %p370
      %p372 = scmp.ne.s32.totalorder %s364, %s366
      %p373 = scmp.eq.s32.totalorder %s31, 1
      %p374 = por %p372, %p373
      %p375 = scmp.ne.s32.totalorder %s366, %s367
      %p376 = scmp.eq.s32.totalorder %s31, 0
      %p377 = por %p375, %p376
      %p378 = scmp.ne.s32.totalorder %s366, %s367
      %p379 = scmp.eq.s32.totalorder %s32, 1
      %p380 = por %p378, %p379
      %p382 = scmp.ne.s32.totalorder %s367, %s381
      %p383 = scmp.eq.s32.totalorder %s32, 0
      %p384 = por %p382, %p383
      %s385 = ssub.s32 %s34, %s41
      %p386 = scmp.eq.s32.totalorder %s385, 0
      %s388 = sadd.s32 %s387, 1
      %s389 = scalar_select %p386, %s387, %s388
      %p392 = pneg %p386
      %p393 = scmp.eq.s32.totalorder %s26, 1
      %p394 = por %p392, %p393
      %p395 = scmp.ne.s32.totalorder %s387, %s390
      %p396 = scmp.eq.s32.totalorder %s26, 0
      %p397 = por %p395, %p396
      %p398 = scmp.ne.s32.totalorder %s387, %s390
      %p399 = scmp.eq.s32.totalorder %s31, 1
      %p400 = por %p398, %p399
      %p401 = scmp.ne.s32.totalorder %s390, %s391
      %p402 = scmp.eq.s32.totalorder %s31, 0
      %p403 = por %p401, %p402
      %p404 = scmp.ne.s32.totalorder %s390, %s391
      %p405 = scmp.eq.s32.totalorder %s32, 1
      %p406 = por %p404, %p405
      %p408 = scmp.ne.s32.totalorder %s391, %s407
      %p409 = scmp.eq.s32.totalorder %s32, 0
      %p410 = por %p408, %p409
      %s412 = sadd.s32 %s411, 1
      %p415 = scmp.eq.s32.totalorder %s26, 1
      %p416 = scmp.ne.s32.totalorder %s411, %s413
      %p417 = scmp.eq.s32.totalorder %s26, 0
      %p418 = por %p416, %p417
      %p419 = scmp.ne.s32.totalorder %s411, %s413
      %p420 = scmp.eq.s32.totalorder %s31, 1
      %p421 = por %p419, %p420
      %p422 = scmp.ne.s32.totalorder %s413, %s414
      %p423 = scmp.eq.s32.totalorder %s31, 0
      %p424 = por %p422, %p423
      %p425 = scmp.ne.s32.totalorder %s413, %s414
      %p426 = scmp.eq.s32.totalorder %s32, 1
      %p427 = por %p425, %p426
      %p429 = scmp.ne.s32.totalorder %s414, %s428
      %p430 = scmp.eq.s32.totalorder %s32, 0
      %p431 = por %p429, %p430
      %s432 = ssub.s32 %s33, %s45
      %s433 = ssub.s32 %s34, %s41
      %s434 = sor.u32 %s432, %s433
      %p435 = scmp.eq.s32.totalorder %s434, 0
      %s437 = sadd.s32 %s436, 1
      %s438 = scalar_select %p435, %s436, %s437
      %p441 = pneg %p435
      %p442 = scmp.eq.s32.totalorder %s26, 1
      %p443 = por %p441, %p442
      %p444 = scmp.ne.s32.totalorder %s436, %s439
      %p445 = scmp.eq.s32.totalorder %s26, 0
      %p446 = por %p444, %p445
      %p447 = scmp.ne.s32.totalorder %s436, %s439
      %p448 = scmp.eq.s32.totalorder %s31, 1
      %p449 = por %p447, %p448
      %p450 = scmp.ne.s32.totalorder %s439, %s440
      %p451 = scmp.eq.s32.totalorder %s31, 0
      %p452 = por %p450, %p451
      %p453 = scmp.ne.s32.totalorder %s439, %s440
      %p454 = scmp.eq.s32.totalorder %s32, 1
      %p455 = por %p453, %p454
      %p457 = scmp.ne.s32.totalorder %s440, %s456
      %p458 = scmp.eq.s32.totalorder %s32, 0
      %p459 = por %p457, %p458
      %p460 = scmp.le.s32.totalorder 1, %s26
      %p461 = scmp.lt.s32.totalorder %s26, 3
      %p462 = pnand %p460, %p461
      %p463 = pneg %p462
      // Predicated region
      $region9: #{hnn_forward.1} parent=5 // pred_check
        _
      $region10: #{hnn_forward.1} parent=5 // pred_check_branch
        %465 = sbr.rel (%p462) target = $region12
      $region11: #{hnn_forward.1} parent=5 // pred_region
        %s466 = ssub.s32 %s26, 1
        // Predicated region
        $region13: #{hnn_forward.1} parent=11 // pred_check
          %p467 = pneg %p85
        $region14: #{hnn_forward.1} parent=11 // pred_check_branch
          %469 = sbr.rel (%p467) target = $region16
        $region15: #{hnn_forward.1} parent=11 // pred_region
          _
        $region16: #{hnn_forward.1} parent=11 // pred_fallthru
          _
        // Predicated region
        $region17: #{hnn_forward.1} parent=11 // pred_check
          %p470 = pneg %p111
        $region18: #{hnn_forward.1} parent=11 // pred_check_branch
          %472 = sbr.rel (%p470) target = $region20
        $region19: #{hnn_forward.1} parent=11 // pred_region
          %s473 = smul.u32 8, %s36
          %p474 = scmp.lt.s32.totalorder %s473, 7
          %s475 = scalar_select %p474, %s473, 7
          %s476 = smul.addr %s475, 8
          %s477 = scalar_lea.vmem %s2, %s476
          %s478 = smul.u32 8, %s36
        $region20: #{hnn_forward.1} parent=11 // pred_fallthru
          _
        // Predicated region
        $region21: #{hnn_forward.1} parent=11 // pred_check
          %p479 = pneg %p158
        $region22: #{hnn_forward.1} parent=11 // pred_check_branch
          %481 = sbr.rel (%p479) target = $region24
        $region23: #{hnn_forward.1} parent=11 // pred_region
          _
        $region24: #{hnn_forward.1} parent=11 // pred_fallthru
          _
        // Predicated region
        $region25: #{hnn_forward.1} parent=11 // pred_check
          %p482 = pneg %p184
        $region26: #{hnn_forward.1} parent=11 // pred_check_branch
          %484 = sbr.rel (%p482) target = $region28
        $region27: #{hnn_forward.1} parent=11 // pred_region
          %s485 = smul.u32 8, %s36
          %p486 = scmp.lt.s32.totalorder %s485, 7
          %s487 = scalar_select %p486, %s485, 7
          %s488 = smul.addr %s487, 8
          %s489 = scalar_lea.vmem %s5, %s488
          %s490 = smul.u32 8, %s36
        $region28: #{hnn_forward.1} parent=11 // pred_fallthru
          _
        // Predicated region
        $region29: #{hnn_forward.1} parent=11 // pred_check
          %p491 = pneg %p231
        $region30: #{hnn_forward.1} parent=11 // pred_check_branch
          %493 = sbr.rel (%p491) target = $region32
        $region31: #{hnn_forward.1} parent=11 // pred_region
          _
        $region32: #{hnn_forward.1} parent=11 // pred_fallthru
          _
        // Predicated region
        $region33: #{hnn_forward.1} parent=11 // pred_check
          %p494 = pneg %p257
        $region34: #{hnn_forward.1} parent=11 // pred_check_branch
          %496 = sbr.rel (%p494) target = $region36
        $region35: #{hnn_forward.1} parent=11 // pred_region
          %s497 = smul.u32 8, %s36
          %p498 = scmp.lt.s32.totalorder %s497, 7
          %s499 = scalar_select %p498, %s497, 7
          %s500 = smul.addr %s499, 8
          %s501 = scalar_lea.vmem %s8, %s500
          %s502 = smul.u32 8, %s36
        $region36: #{hnn_forward.1} parent=11 // pred_fallthru
          _
        // Predicated region
        $region37: #{hnn_forward.1} parent=11 // pred_check
          %p503 = pneg %p304
        $region38: #{hnn_forward.1} parent=11 // pred_check_branch
          %505 = sbr.rel (%p503) target = $region40
        $region39: #{hnn_forward.1} parent=11 // pred_region
          _
        $region40: #{hnn_forward.1} parent=11 // pred_fallthru
          _
        // Predicated region
        $region41: #{hnn_forward.1} parent=11 // pred_check
          %p506 = pneg %p330
        $region42: #{hnn_forward.1} parent=11 // pred_check_branch
          %508 = sbr.rel (%p506) target = $region44
        $region43: #{hnn_forward.1} parent=11 // pred_region
          %s509 = smul.u32 8, %s36
          %p510 = scmp.lt.s32.totalorder %s509, 7
          %s511 = scalar_select %p510, %s509, 7
          %s512 = smul.addr %s511, 8
          %s513 = scalar_lea.vmem %s11, %s512
          %s514 = smul.u32 8, %s36
        $region44: #{hnn_forward.1} parent=11 // pred_fallthru
          _
        // Predicated region
        $region45: #{hnn_forward.1} parent=11 // pred_check
          %p515 = pneg %p377
        $region46: #{hnn_forward.1} parent=11 // pred_check_branch
          %517 = sbr.rel (%p515) target = $region48
        $region47: #{hnn_forward.1} parent=11 // pred_region
          _
        $region48: #{hnn_forward.1} parent=11 // pred_fallthru
          _
        // Predicated region
        $region49: #{hnn_forward.1} parent=11 // pred_check
          %p518 = pneg %p403
        $region50: #{hnn_forward.1} parent=11 // pred_check_branch
          %520 = sbr.rel (%p518) target = $region52
        $region51: #{hnn_forward.1} parent=11 // pred_region
          %s521 = smul.u32 8, %s36
          %p522 = scmp.lt.s32.totalorder %s521, 7
          %s523 = scalar_select %p522, %s521, 7
          %s524 = smul.addr %s523, 8
          %s525 = scalar_lea.vmem %s14, %s524
          %s526 = smul.u32 8, %s36
        $region52: #{hnn_forward.1} parent=11 // pred_fallthru
          _
        // Predicated region
        $region53: #{hnn_forward.1} parent=11 // pred_check
          %p527 = pneg %p424
        $region54: #{hnn_forward.1} parent=11 // pred_check_branch
          %529 = sbr.rel (%p527) target = $region56
        $region55: #{hnn_forward.1} parent=11 // pred_region
          _
        $region56: #{hnn_forward.1} parent=11 // pred_fallthru
          _
      $region12: #{hnn_forward.1} parent=5 // pred_fallthru
        _
      %p530 = scmp.lt.s32.totalorder %s26, 2
      // Predicated region
      $region57: #{hnn_forward.1} parent=5 // pred_check
        %p531 = pneg %p530
      $region58: #{hnn_forward.1} parent=5 // pred_check_branch
        %533 = sbr.rel (%p531) target = $region60
      $region59: #{hnn_forward.1} parent=5 // pred_region
        // Predicated region
        $region61: #{hnn_forward.1} parent=59 // pred_check
          %p534 = pneg %p58
        $region62: #{hnn_forward.1} parent=59 // pred_check_branch
          %536 = sbr.rel (%p534) target = $region64
        $region63: #{hnn_forward.1} parent=59 // pred_region
          %p537 = scmp.lt.s32.totalorder %s33, 1
          %s538 = scalar_select %p537, %s33, 1
          %s539 = smul.addr %s538, 8
          %s540 = smul.addr %s539, 8
          %s541 = scalar_lea.vmem %s0, %s540
        $region64: #{hnn_forward.1} parent=59 // pred_fallthru
          _
        // Predicated region
        $region65: #{hnn_forward.1} parent=59 // pred_check
          %p542 = pneg %p131
        $region66: #{hnn_forward.1} parent=59 // pred_check_branch
          %544 = sbr.rel (%p542) target = $region68
        $region67: #{hnn_forward.1} parent=59 // pred_region
          %p545 = scmp.lt.s32.totalorder %s33, 1
          %s546 = scalar_select %p545, %s33, 1
          %s547 = smul.addr %s546, 4
          %s548 = smul.addr %s547, 8
          %s549 = scalar_lea.vmem %s3, %s548
        $region68: #{hnn_forward.1} parent=59 // pred_fallthru
          _
        // Predicated region
        $region69: #{hnn_forward.1} parent=59 // pred_check
          %p550 = pneg %p204
        $region70: #{hnn_forward.1} parent=59 // pred_check_branch
          %552 = sbr.rel (%p550) target = $region72
        $region71: #{hnn_forward.1} parent=59 // pred_region
          %p553 = scmp.lt.s32.totalorder %s33, 1
          %s554 = scalar_select %p553, %s33, 1
          %s555 = smul.addr %s554, 2
          %s556 = smul.addr %s555, 8
          %s557 = scalar_lea.vmem %s6, %s556
        $region72: #{hnn_forward.1} parent=59 // pred_fallthru
          _
        // Predicated region
        $region73: #{hnn_forward.1} parent=59 // pred_check
          %p558 = pneg %p277
        $region74: #{hnn_forward.1} parent=59 // pred_check_branch
          %560 = sbr.rel (%p558) target = $region76
        $region75: #{hnn_forward.1} parent=59 // pred_region
          %p561 = scmp.lt.s32.totalorder %s33, 1
          %s562 = scalar_select %p561, %s33, 1
          %s563 = smul.addr %s562, 2
          %s564 = smul.addr %s563, 4
          %s565 = scalar_lea.vmem %s9, %s564
        $region76: #{hnn_forward.1} parent=59 // pred_fallthru
          _
        // Predicated region
        $region77: #{hnn_forward.1} parent=59 // pred_check
          %p566 = pneg %p350
        $region78: #{hnn_forward.1} parent=59 // pred_check_branch
          %568 = sbr.rel (%p566) target = $region80
        $region79: #{hnn_forward.1} parent=59 // pred_region
          %p569 = scmp.lt.s32.totalorder %s33, 1
          %s570 = scalar_select %p569, %s33, 1
          %s571 = smul.addr %s570, 2
          %s572 = scalar_lea.vmem %s12, %s571
        $region80: #{hnn_forward.1} parent=59 // pred_fallthru
          _
      $region60: #{hnn_forward.1} parent=5 // pred_fallthru
        _
      %p573 = scmp.le.s32.totalorder 1, %s26
      %p574 = scmp.lt.s32.totalorder %s26, 3
      %p575 = pnand %p573, %p574
      %p576 = pneg %p575
      // Predicated region
      $region81: #{hnn_forward.1} parent=5 // pred_check
        _
      $region82: #{hnn_forward.1} parent=5 // pred_check_branch
        %578 = sbr.rel (%p575) target = $region84
      $region83: #{hnn_forward.1} parent=5 // pred_region
        %s579 = ssub.s32 %s26, 1
        %p580 = scmp.lt.s32.totalorder %s35, 1
        %s581 = scalar_select %p580, %s35, 1
        %s582 = smul.addr %s581, 8
        %s583 = smul.addr %s582, 8
        %s584 = scalar_lea.vmem %s0, %s583
        %p585 = pneg %p64
        %p586 = pneg %p61
        %p587 = pneg %p85
        %p588 = pneg %p82
        %s589 = smul.u32 8, %s36
        %p590 = scmp.lt.s32.totalorder %s589, 7
        %s591 = scalar_select %p590, %s589, 7
        %s592 = smul.addr %s591, 8
        %s593 = scalar_lea.vmem %s2, %s592
        %p594 = pneg %p111
        %p595 = pneg %p108
        %p596 = scmp.lt.s32.totalorder %s35, 1
        %s597 = scalar_select %p596, %s35, 1
        %s598 = smul.addr %s597, 4
        %s599 = smul.addr %s598, 8
        %s600 = scalar_lea.vmem %s3, %s599
        %p601 = pneg %p137
        %p602 = pneg %p134
        %p603 = pneg %p158
        %p604 = pneg %p155
        %s605 = smul.u32 8, %s36
        %p606 = scmp.lt.s32.totalorder %s605, 7
        %s607 = scalar_select %p606, %s605, 7
        %s608 = smul.addr %s607, 8
        %s609 = scalar_lea.vmem %s5, %s608
        %p610 = pneg %p184
        %p611 = pneg %p181
        %p612 = scmp.lt.s32.totalorder %s35, 1
        %s613 = scalar_select %p612, %s35, 1
        %s614 = smul.addr %s613, 2
        %s615 = smul.addr %s614, 8
        %s616 = scalar_lea.vmem %s6, %s615
        %p617 = pneg %p210
        %p618 = pneg %p207
        %p619 = pneg %p231
        %p620 = pneg %p228
        %s621 = smul.u32 8, %s36
        %p622 = scmp.lt.s32.totalorder %s621, 7
        %s623 = scalar_select %p622, %s621, 7
        %s624 = smul.addr %s623, 8
        %s625 = scalar_lea.vmem %s8, %s624
        %p626 = pneg %p257
        %p627 = pneg %p254
        %p628 = scmp.lt.s32.totalorder %s35, 1
        %s629 = scalar_select %p628, %s35, 1
        %s630 = smul.addr %s629, 2
        %s631 = smul.addr %s630, 4
        %s632 = scalar_lea.vmem %s9, %s631
        %p633 = pneg %p283
        %p634 = pneg %p280
        %p635 = pneg %p304
        %p636 = pneg %p301
        %s637 = smul.u32 8, %s36
        %p638 = scmp.lt.s32.totalorder %s637, 7
        %s639 = scalar_select %p638, %s637, 7
        %s640 = smul.addr %s639, 8
        %s641 = scalar_lea.vmem %s11, %s640
        %p642 = pneg %p330
        %p643 = pneg %p327
        %p644 = scmp.lt.s32.totalorder %s35, 1
        %s645 = scalar_select %p644, %s35, 1
        %s646 = smul.addr %s645, 2
        %s647 = scalar_lea.vmem %s12, %s646
        %p648 = pneg %p356
        %p649 = pneg %p353
        %p650 = pneg %p377
        %p651 = pneg %p374
        %s652 = smul.u32 8, %s36
        %p653 = scmp.lt.s32.totalorder %s652, 7
        %s654 = scalar_select %p653, %s652, 7
        %s655 = smul.addr %s654, 8
        %s656 = scalar_lea.vmem %s14, %s655
        %p657 = pneg %p403
        %p658 = pneg %p400
        %p659 = pneg %p424
        %p660 = pneg %p421
        %p661 = pneg %p452
        %p662 = pneg %p449
        %s663 = sand.u32 %s439, 1
        %s664 = scalar_lea.sflag [#allocation4], %s663
        %s665 = sand.u32 %s439, 1
        %s666 = smul.addr %s665, 64
        %s667 = scalar_lea.vmem [#allocation3], %s666
        %p668 = scmp.lt.s32.totalorder %s35, 1
        %s669 = scalar_select %p668, %s35, 1
        %s670 = smul.addr %s669, 8
        %s671 = smul.addr %s670, 8
        %s672 = scalar_lea.vmem %s0, %s671
        %s673 = smul.u32 8, %s36
        %p674 = scmp.lt.s32.totalorder %s673, 7
        %s675 = scalar_select %p674, %s673, 7
        %s676 = smul.addr %s675, 8
        %s677 = scalar_lea.vmem %s2, %s676
        %s678 = smul.u32 8, %s36
        %p679 = scmp.lt.s32.totalorder %s35, 1
        %s680 = scalar_select %p679, %s35, 1
        %s681 = smul.addr %s680, 4
        %s682 = smul.addr %s681, 8
        %s683 = scalar_lea.vmem %s3, %s682
        %s684 = smul.u32 8, %s36
        %p685 = scmp.lt.s32.totalorder %s684, 7
        %s686 = scalar_select %p685, %s684, 7
        %s687 = smul.addr %s686, 8
        %s688 = scalar_lea.vmem %s5, %s687
        %s689 = smul.u32 8, %s36
        %p690 = scmp.lt.s32.totalorder %s35, 1
        %s691 = scalar_select %p690, %s35, 1
        %s692 = smul.addr %s691, 2
        %s693 = smul.addr %s692, 8
        %s694 = scalar_lea.vmem %s6, %s693
        %s695 = smul.u32 8, %s36
        %p696 = scmp.lt.s32.totalorder %s695, 7
        %s697 = scalar_select %p696, %s695, 7
        %s698 = smul.addr %s697, 8
        %s699 = scalar_lea.vmem %s8, %s698
        %s700 = smul.u32 8, %s36
        %p701 = scmp.lt.s32.totalorder %s35, 1
        %s702 = scalar_select %p701, %s35, 1
        %s703 = smul.addr %s702, 2
        %s704 = smul.addr %s703, 4
        %s705 = scalar_lea.vmem %s9, %s704
        %s706 = smul.u32 8, %s36
        %p707 = scmp.lt.s32.totalorder %s706, 7
        %s708 = scalar_select %p707, %s706, 7
        %s709 = smul.addr %s708, 8
        %s710 = scalar_lea.vmem %s11, %s709
        %s711 = smul.u32 8, %s36
        %p712 = scmp.lt.s32.totalorder %s35, 1
        %s713 = scalar_select %p712, %s35, 1
        %s714 = smul.addr %s713, 2
        %s715 = scalar_lea.vmem %s12, %s714
        %s716 = smul.u32 8, %s36
        %p717 = scmp.lt.s32.totalorder %s716, 7
        %s718 = scalar_select %p717, %s716, 7
        %s719 = smul.addr %s718, 8
        %s720 = scalar_lea.vmem %s14, %s719
        %s721 = smul.u32 8, %s36
        %s722 = smul.u32 8, %s36
        %v723 = vld [vmem:[%s672] sm:$0xff]
        %v724 = vld [vmem:[%s672 + $0x8] sm:$0xff]
        %v725 = vld [vmem:[%s672 + $0x10] sm:$0xff]
        %v726 = vld [vmem:[%s672 + $0x18] sm:$0xff]
        %v727 = vld [vmem:[%s672 + $0x20] sm:$0xff]
        %v728 = vld [vmem:[%s672 + $0x28] sm:$0xff]
        %v729 = vld [vmem:[%s672 + $0x30] sm:$0xff]
        %v730 = vld [vmem:[%s672 + $0x38] sm:$0xff]
        %v731 = vld [vmem:[%s1] sm:$0xff]
        %v732 = vld [vmem:[%s1 + $0x8] sm:$0xff]
        %v733 = vld [vmem:[%s1 + $0x10] sm:$0xff]
        %v734 = vld [vmem:[%s1 + $0x18] sm:$0xff]
        %v735 = vld [vmem:[%s1 + $0x20] sm:$0xff]
        %v736 = vld [vmem:[%s1 + $0x28] sm:$0xff]
        %v737 = vld [vmem:[%s1 + $0x30] sm:$0xff]
        %v738 = vld [vmem:[%s1 + $0x38] sm:$0xff]
        %v739 = vld [vmem:[%s1 + $0x40] sm:$0xff]
        %v740 = vld [vmem:[%s1 + $0x48] sm:$0xff]
        %v741 = vld [vmem:[%s1 + $0x50] sm:$0xff]
        %v742 = vld [vmem:[%s1 + $0x58] sm:$0xff]
        %v743 = vld [vmem:[%s1 + $0x60] sm:$0xff]
        %v744 = vld [vmem:[%s1 + $0x68] sm:$0xff]
        %v745 = vld [vmem:[%s1 + $0x70] sm:$0xff]
        %v746 = vld [vmem:[%s1 + $0x78] sm:$0xff]
        %v747 = vld [vmem:[%s1 + $0x80] sm:$0xff]
        %v748 = vld [vmem:[%s1 + $0x88] sm:$0xff]
        %v749 = vld [vmem:[%s1 + $0x90] sm:$0xff]
        %v750 = vld [vmem:[%s1 + $0x98] sm:$0xff]
        %v751 = vld [vmem:[%s1 + $0xa0] sm:$0xff]
        %v752 = vld [vmem:[%s1 + $0xa8] sm:$0xff]
        %v753 = vld [vmem:[%s1 + $0xb0] sm:$0xff]
        %v754 = vld [vmem:[%s1 + $0xb8] sm:$0xff]
        %v755 = vld [vmem:[%s1 + $0xc0] sm:$0xff]
        %v756 = vld [vmem:[%s1 + $0xc8] sm:$0xff]
        %v757 = vld [vmem:[%s1 + $0xd0] sm:$0xff]
        %v758 = vld [vmem:[%s1 + $0xd8] sm:$0xff]
        %v759 = vld [vmem:[%s1 + $0xe0] sm:$0xff]
        %v760 = vld [vmem:[%s1 + $0xe8] sm:$0xff]
        %v761 = vld [vmem:[%s1 + $0xf0] sm:$0xff]
        %v762 = vld [vmem:[%s1 + $0xf8] sm:$0xff]
        %763 = vmatprep.subr.mxu0 0.0
        %764 = vmatpush1.msra.mxu0 %v746
        %765 = vmatprep.subr.mxu0 0.0
        %766 = vmatpush1.msra.mxu0 %v745
        %767 = vmatprep.subr.mxu0 0.0
        %768 = vmatpush1.msra.mxu0 %v744
        %769 = vmatprep.subr.mxu0 0.0
        %770 = vmatpush1.msra.mxu0 %v743
        %771 = vmatprep.subr.mxu0 0.0
        %772 = vmatpush1.msra.mxu0 %v742
        %773 = vmatprep.subr.mxu0 0.0
        %774 = vmatpush1.msra.mxu0 %v741
        %775 = vmatprep.subr.mxu0 0.0
        %776 = vmatpush1.msra.mxu0 %v740
        %777 = vmatprep.subr.mxu0 0.0
        %778 = vmatpush1.msra.mxu0 %v739
        %779 = vmatprep.subr.mxu0 0.0
        %780 = vmatpush1.msra.mxu0 %v738
        %781 = vmatprep.subr.mxu0 0.0
        %782 = vmatpush1.msra.mxu0 %v737
        %783 = vmatprep.subr.mxu0 0.0
        %784 = vmatpush1.msra.mxu0 %v736
        %785 = vmatprep.subr.mxu0 0.0
        %786 = vmatpush1.msra.mxu0 %v735
        %787 = vmatprep.subr.mxu0 0.0
        %788 = vmatpush1.msra.mxu0 %v734
        %789 = vmatprep.subr.mxu0 0.0
        %790 = vmatpush1.msra.mxu0 %v733
        %791 = vmatprep.subr.mxu0 0.0
        %792 = vmatpush1.msra.mxu0 %v732
        %793 = vmatprep.subr.mxu0 0.0
        %794 = vmatpush1.msra.mxu0 %v731
        %795 = vmatprep.subr.mxu0 0.0
        %796 = vmatpush2.msra.mxu0 %v762
        %797 = vmatprep.subr.mxu0 0.0
        %798 = vmatpush2.msra.mxu0 %v761
        %799 = vmatprep.subr.mxu0 0.0
        %800 = vmatpush2.msra.mxu0 %v760
        %801 = vmatprep.subr.mxu0 0.0
        %802 = vmatpush2.msra.mxu0 %v759
        %803 = vmatprep.subr.mxu0 0.0
        %804 = vmatpush2.msra.mxu0 %v758
        %805 = vmatprep.subr.mxu0 0.0
        %806 = vmatpush2.msra.mxu0 %v757
        %807 = vmatprep.subr.mxu0 0.0
        %808 = vmatpush2.msra.mxu0 %v756
        %809 = vmatprep.subr.mxu0 0.0
        %810 = vmatpush2.msra.mxu0 %v755
        %811 = vmatprep.subr.mxu0 0.0
        %812 = vmatpush2.msra.mxu0 %v754
        %813 = vmatprep.subr.mxu0 0.0
        %814 = vmatpush2.msra.mxu0 %v753
        %815 = vmatprep.subr.mxu0 0.0
        %816 = vmatpush2.msra.mxu0 %v752
        %817 = vmatprep.subr.mxu0 0.0
        %818 = vmatpush2.msra.mxu0 %v751
        %819 = vmatprep.subr.mxu0 0.0
        %820 = vmatpush2.msra.mxu0 %v750
        %821 = vmatprep.subr.mxu0 0.0
        %822 = vmatpush2.msra.mxu0 %v749
        %823 = vmatprep.subr.mxu0 0.0
        %824 = vmatpush2.msra.mxu0 %v748
        %825 = vmatprep.subr.mxu0 0.0
        %826 = vmatpush2.msra.mxu0 %v747
        %827 = vmatprep.mubr.f32.mxu0 %v724
        %828 = vmatmul.mubr.f32.gmra.mxu0 %v723
        %v829 = vpop.f32.mrf.mxu0
        %v830 = vadd.f32 0.0, %v829
        %v831 = vpop.f32.mrf.mxu0
        %832 = vmatprep.mubr.f32.mxu0 %v726
        %833 = vmatmul.mubr.f32.gmra.mxu0 %v725
        %v834 = vpop.f32.mrf.mxu0
        %v835 = vadd.f32 0.0, %v834
        %v836 = vpop.f32.mrf.mxu0
        %837 = vmatprep.mubr.f32.mxu0 %v728
        %838 = vmatmul.mubr.f32.gmra.mxu0 %v727
        %v839 = vpop.f32.mrf.mxu0
        %v840 = vadd.f32 0.0, %v839
        %v841 = vpop.f32.mrf.mxu0
        %842 = vmatprep.mubr.f32.mxu0 %v730
        %843 = vmatmul.mubr.f32.gmra.mxu0 %v729
        %v844 = vpop.f32.mrf.mxu0
        %v845 = vadd.f32 0.0, %v844
        %v846 = vpop.f32.mrf.mxu0
        %847 = vdwg.mxu0
        %v848 = vld [vmem:[%s677] sm:$0xff]
        %v849 = vld [vmem:[%s677 + $0x8] sm:$0xff]
        %v850 = vld [vmem:[%s677 + $0x10] sm:$0xff]
        %v851 = vld [vmem:[%s677 + $0x18] sm:$0xff]
        %v852 = vld [vmem:[%s677 + $0x20] sm:$0xff]
        %v853 = vld [vmem:[%s677 + $0x28] sm:$0xff]
        %v854 = vld [vmem:[%s677 + $0x30] sm:$0xff]
        %v855 = vld [vmem:[%s677 + $0x38] sm:$0xff]
        %v856 = vld [vmem:[%s683] sm:$0xff]
        %v857 = vld [vmem:[%s683 + $0x8] sm:$0xff]
        %v858 = vld [vmem:[%s683 + $0x10] sm:$0xff]
        %v859 = vld [vmem:[%s683 + $0x18] sm:$0xff]
        %v860 = vld [vmem:[%s4] sm:$0xff]
        %v861 = vld [vmem:[%s4 + $0x8] sm:$0xff]
        %v862 = vld [vmem:[%s4 + $0x10] sm:$0xff]
        %v863 = vld [vmem:[%s4 + $0x18] sm:$0xff]
        %v864 = vld [vmem:[%s4 + $0x20] sm:$0xff]
        %v865 = vld [vmem:[%s4 + $0x28] sm:$0xff]
        %v866 = vld [vmem:[%s4 + $0x30] sm:$0xff]
        %v867 = vld [vmem:[%s4 + $0x38] sm:$0xff]
        %v868 = vld [vmem:[%s4 + $0x40] sm:$0xff]
        %v869 = vld [vmem:[%s4 + $0x48] sm:$0xff]
        %v870 = vld [vmem:[%s4 + $0x50] sm:$0xff]
        %v871 = vld [vmem:[%s4 + $0x58] sm:$0xff]
        %v872 = vld [vmem:[%s4 + $0x60] sm:$0xff]
        %v873 = vld [vmem:[%s4 + $0x68] sm:$0xff]
        %v874 = vld [vmem:[%s4 + $0x70] sm:$0xff]
        %v875 = vld [vmem:[%s4 + $0x78] sm:$0xff]
        %v876 = vld [vmem:[%s4 + $0x80] sm:$0xff]
        %v877 = vld [vmem:[%s4 + $0x88] sm:$0xff]
        %v878 = vld [vmem:[%s4 + $0x90] sm:$0xff]
        %v879 = vld [vmem:[%s4 + $0x98] sm:$0xff]
        %v880 = vld [vmem:[%s4 + $0xa0] sm:$0xff]
        %v881 = vld [vmem:[%s4 + $0xa8] sm:$0xff]
        %v882 = vld [vmem:[%s4 + $0xb0] sm:$0xff]
        %v883 = vld [vmem:[%s4 + $0xb8] sm:$0xff]
        %v884 = vld [vmem:[%s4 + $0xc0] sm:$0xff]
        %v885 = vld [vmem:[%s4 + $0xc8] sm:$0xff]
        %v886 = vld [vmem:[%s4 + $0xd0] sm:$0xff]
        %v887 = vld [vmem:[%s4 + $0xd8] sm:$0xff]
        %v888 = vld [vmem:[%s4 + $0xe0] sm:$0xff]
        %v889 = vld [vmem:[%s4 + $0xe8] sm:$0xff]
        %v890 = vld [vmem:[%s4 + $0xf0] sm:$0xff]
        %v891 = vld [vmem:[%s4 + $0xf8] sm:$0xff]
        %892 = vmatprep.subr.mxu0 0.0
        %893 = vmatpush1.msra.mxu0 %v875
        %894 = vmatprep.subr.mxu0 0.0
        %895 = vmatpush1.msra.mxu0 %v874
        %896 = vmatprep.subr.mxu0 0.0
        %897 = vmatpush1.msra.mxu0 %v873
        %898 = vmatprep.subr.mxu0 0.0
        %899 = vmatpush1.msra.mxu0 %v872
        %900 = vmatprep.subr.mxu0 0.0
        %901 = vmatpush1.msra.mxu0 %v871
        %902 = vmatprep.subr.mxu0 0.0
        %903 = vmatpush1.msra.mxu0 %v870
        %904 = vmatprep.subr.mxu0 0.0
        %905 = vmatpush1.msra.mxu0 %v869
        %906 = vmatprep.subr.mxu0 0.0
        %907 = vmatpush1.msra.mxu0 %v868
        %908 = vmatprep.subr.mxu0 0.0
        %909 = vmatpush1.msra.mxu0 %v867
        %910 = vmatprep.subr.mxu0 0.0
        %911 = vmatpush1.msra.mxu0 %v866
        %912 = vmatprep.subr.mxu0 0.0
        %913 = vmatpush1.msra.mxu0 %v865
        %914 = vmatprep.subr.mxu0 0.0
        %915 = vmatpush1.msra.mxu0 %v864
        %916 = vmatprep.subr.mxu0 0.0
        %917 = vmatpush1.msra.mxu0 %v863
        %918 = vmatprep.subr.mxu0 0.0
        %919 = vmatpush1.msra.mxu0 %v862
        %920 = vmatprep.subr.mxu0 0.0
        %921 = vmatpush1.msra.mxu0 %v861
        %922 = vmatprep.subr.mxu0 0.0
        %923 = vmatpush1.msra.mxu0 %v860
        %924 = vmatprep.subr.mxu0 0.0
        %925 = vmatpush2.msra.mxu0 %v891
        %926 = vmatprep.subr.mxu0 0.0
        %927 = vmatpush2.msra.mxu0 %v890
        %928 = vmatprep.subr.mxu0 0.0
        %929 = vmatpush2.msra.mxu0 %v889
        %930 = vmatprep.subr.mxu0 0.0
        %931 = vmatpush2.msra.mxu0 %v888
        %932 = vmatprep.subr.mxu0 0.0
        %933 = vmatpush2.msra.mxu0 %v887
        %934 = vmatprep.subr.mxu0 0.0
        %935 = vmatpush2.msra.mxu0 %v886
        %936 = vmatprep.subr.mxu0 0.0
        %937 = vmatpush2.msra.mxu0 %v885
        %938 = vmatprep.subr.mxu0 0.0
        %939 = vmatpush2.msra.mxu0 %v884
        %940 = vmatprep.subr.mxu0 0.0
        %941 = vmatpush2.msra.mxu0 %v883
        %942 = vmatprep.subr.mxu0 0.0
        %943 = vmatpush2.msra.mxu0 %v882
        %944 = vmatprep.subr.mxu0 0.0
        %945 = vmatpush2.msra.mxu0 %v881
        %946 = vmatprep.subr.mxu0 0.0
        %947 = vmatpush2.msra.mxu0 %v880
        %948 = vmatprep.subr.mxu0 0.0
        %949 = vmatpush2.msra.mxu0 %v879
        %950 = vmatprep.subr.mxu0 0.0
        %951 = vmatpush2.msra.mxu0 %v878
        %952 = vmatprep.subr.mxu0 0.0
        %953 = vmatpush2.msra.mxu0 %v877
        %954 = vmatprep.subr.mxu0 0.0
        %955 = vmatpush2.msra.mxu0 %v876
        %956 = vmatprep.mubr.f32.mxu0 %v857
        %957 = vmatmul.mubr.f32.gmra.mxu0 %v856
        %v958 = vpop.f32.mrf.mxu0
        %v959 = vadd.f32 0.0, %v958
        %v960 = vpop.f32.mrf.mxu0
        %961 = vmatprep.mubr.f32.mxu0 %v859
        %962 = vmatmul.mubr.f32.gmra.mxu0 %v858
        %v963 = vpop.f32.mrf.mxu0
        %v964 = vadd.f32 0.0, %v963
        %v965 = vpop.f32.mrf.mxu0
        %966 = vdwg.mxu0
        %v967 = vld [vmem:[%s688] sm:$0xff]
        %v968 = vld [vmem:[%s688 + $0x8] sm:$0xff]
        %v969 = vld [vmem:[%s688 + $0x10] sm:$0xff]
        %v970 = vld [vmem:[%s688 + $0x18] sm:$0xff]
        %v971 = vld [vmem:[%s688 + $0x20] sm:$0xff]
        %v972 = vld [vmem:[%s688 + $0x28] sm:$0xff]
        %v973 = vld [vmem:[%s688 + $0x30] sm:$0xff]
        %v974 = vld [vmem:[%s688 + $0x38] sm:$0xff]
        %vm975 = vcmask 130048
        %v977 = vsel %vm975, %v967, 0
        %v980 = vsel %vm975, %v968, 0
        %v983 = vsel %vm975, %v969, 0
        %v986 = vsel %vm975, %v970, 0
        %v989 = vsel %vm975, %v971, 0
        %v992 = vsel %vm975, %v972, 0
        %v995 = vsel %vm975, %v973, 0
        %v998 = vsel %vm975, %v974, 0
        %1000 = vmatprep.subr.mxu0 0.0
        %1001 = vmatpush1.msra.mxu0 0.0
        %1002 = vmatprep.subr.mxu0 0.0
        %1003 = vmatpush1.msra.mxu0 0.0
        %1004 = vmatprep.subr.mxu0 0.0
        %1005 = vmatpush1.msra.mxu0 0.0
        %1006 = vmatprep.subr.mxu0 0.0
        %1007 = vmatpush1.msra.mxu0 0.0
        %1008 = vmatprep.subr.mxu0 0.0
        %1009 = vmatpush1.msra.mxu0 0.0
        %1010 = vmatprep.subr.mxu0 0.0
        %1011 = vmatpush1.msra.mxu0 0.0
        %1012 = vmatprep.subr.mxu0 0.0
        %1013 = vmatpush1.msra.mxu0 0.0
        %1014 = vmatprep.subr.mxu0 0.0
        %1015 = vmatpush1.msra.mxu0 0.0
        %1016 = vmatprep.subr.mxu0 0.0
        %1017 = vmatpush1.msra.mxu0 0.0
        %1018 = vmatprep.subr.mxu0 0.0
        %1019 = vmatpush1.msra.mxu0 0.0
        %1020 = vmatprep.subr.mxu0 0.0
        %1021 = vmatpush1.msra.mxu0 0.0
        %1022 = vmatprep.subr.mxu0 0.0
        %1023 = vmatpush1.msra.mxu0 0.0
        %1024 = vmatprep.subr.mxu0 0.0
        %1025 = vmatpush1.msra.mxu0 0.0
        %1026 = vmatprep.subr.mxu0 0.0
        %1027 = vmatpush1.msra.mxu0 0.0
        %1028 = vmatprep.subr.mxu0 0.0
        %1029 = vmatpush1.msra.mxu0 %v964
        %1030 = vmatprep.subr.mxu0 0.0
        %1031 = vmatpush1.msra.mxu0 %v959
        %1032 = vmatprep.subr.mxu0 0.0
        %1033 = vmatpush2.msra.mxu0 0.0
        %1034 = vmatprep.subr.mxu0 0.0
        %1035 = vmatpush2.msra.mxu0 0.0
        %1036 = vmatprep.subr.mxu0 0.0
        %1037 = vmatpush2.msra.mxu0 0.0
        %1038 = vmatprep.subr.mxu0 0.0
        %1039 = vmatpush2.msra.mxu0 0.0
        %1040 = vmatprep.subr.mxu0 0.0
        %1041 = vmatpush2.msra.mxu0 0.0
        %1042 = vmatprep.subr.mxu0 0.0
        %1043 = vmatpush2.msra.mxu0 0.0
        %1044 = vmatprep.subr.mxu0 0.0
        %1045 = vmatpush2.msra.mxu0 0.0
        %1046 = vmatprep.subr.mxu0 0.0
        %1047 = vmatpush2.msra.mxu0 0.0
        %1048 = vmatprep.subr.mxu0 0.0
        %1049 = vmatpush2.msra.mxu0 0.0
        %1050 = vmatprep.subr.mxu0 0.0
        %1051 = vmatpush2.msra.mxu0 0.0
        %1052 = vmatprep.subr.mxu0 0.0
        %1053 = vmatpush2.msra.mxu0 0.0
        %1054 = vmatprep.subr.mxu0 0.0
        %1055 = vmatpush2.msra.mxu0 0.0
        %1056 = vmatprep.subr.mxu0 0.0
        %1057 = vmatpush2.msra.mxu0 0.0
        %1058 = vmatprep.subr.mxu0 0.0
        %1059 = vmatpush2.msra.mxu0 0.0
        %1060 = vmatprep.subr.mxu0 0.0
        %1061 = vmatpush2.msra.mxu0 0.0
        %1062 = vmatprep.subr.mxu0 0.0
        %1063 = vmatpush2.msra.mxu0 0.0
        %1064 = vmatprep.mubr.f32.mxu0 0.0
        %1065 = vmatmul.mubr.f32.gmra.mxu0 %v977
        %v1066 = vpop.f32.mrf.mxu0
        %v1067 = vadd.f32 0.0, %v1066
        %v1068 = vpop.f32.mrf.mxu0
        %1069 = vmatprep.mubr.f32.mxu0 0.0
        %1070 = vmatmul.mubr.f32.gmra.mxu0 %v980
        %v1071 = vpop.f32.mrf.mxu0
        %v1072 = vadd.f32 0.0, %v1071
        %v1073 = vpop.f32.mrf.mxu0
        %1074 = vmatprep.mubr.f32.mxu0 0.0
        %1075 = vmatmul.mubr.f32.gmra.mxu0 %v983
        %v1076 = vpop.f32.mrf.mxu0
        %v1077 = vadd.f32 0.0, %v1076
        %v1078 = vpop.f32.mrf.mxu0
        %1079 = vmatprep.mubr.f32.mxu0 0.0
        %1080 = vmatmul.mubr.f32.gmra.mxu0 %v986
        %v1081 = vpop.f32.mrf.mxu0
        %v1082 = vadd.f32 0.0, %v1081
        %v1083 = vpop.f32.mrf.mxu0
        %1084 = vmatprep.mubr.f32.mxu0 0.0
        %1085 = vmatmul.mubr.f32.gmra.mxu0 %v989
        %v1086 = vpop.f32.mrf.mxu0
        %v1087 = vadd.f32 0.0, %v1086
        %v1088 = vpop.f32.mrf.mxu0
        %1089 = vmatprep.mubr.f32.mxu0 0.0
        %1090 = vmatmul.mubr.f32.gmra.mxu0 %v992
        %v1091 = vpop.f32.mrf.mxu0
        %v1092 = vadd.f32 0.0, %v1091
        %v1093 = vpop.f32.mrf.mxu0
        %1094 = vmatprep.mubr.f32.mxu0 0.0
        %1095 = vmatmul.mubr.f32.gmra.mxu0 %v995
        %v1096 = vpop.f32.mrf.mxu0
        %v1097 = vadd.f32 0.0, %v1096
        %v1098 = vpop.f32.mrf.mxu0
        %1099 = vmatprep.mubr.f32.mxu0 0.0
        %1100 = vmatmul.mubr.f32.gmra.mxu0 %v998
        %v1101 = vpop.f32.mrf.mxu0
        %v1102 = vadd.f32 0.0, %v1101
        %v1103 = vpop.f32.mrf.mxu0
        %1104 = vdwg.mxu0
        %vm1105 = vcmask 261120
        %v1107 = vsel %vm1105, %v848, 0
        %v1110 = vsel %vm1105, %v849, 0
        %v1113 = vsel %vm1105, %v850, 0
        %v1116 = vsel %vm1105, %v851, 0
        %v1119 = vsel %vm1105, %v852, 0
        %v1122 = vsel %vm1105, %v853, 0
        %v1125 = vsel %vm1105, %v854, 0
        %v1128 = vsel %vm1105, %v855, 0
        %1130 = vmatprep.subr.mxu0 0.0
        %1131 = vmatpush1.msra.mxu0 0.0
        %1132 = vmatprep.subr.mxu0 0.0
        %1133 = vmatpush1.msra.mxu0 0.0
        %1134 = vmatprep.subr.mxu0 0.0
        %1135 = vmatpush1.msra.mxu0 0.0
        %1136 = vmatprep.subr.mxu0 0.0
        %1137 = vmatpush1.msra.mxu0 0.0
        %1138 = vmatprep.subr.mxu0 0.0
        %1139 = vmatpush1.msra.mxu0 0.0
        %1140 = vmatprep.subr.mxu0 0.0
        %1141 = vmatpush1.msra.mxu0 0.0
        %1142 = vmatprep.subr.mxu0 0.0
        %1143 = vmatpush1.msra.mxu0 0.0
        %1144 = vmatprep.subr.mxu0 0.0
        %1145 = vmatpush1.msra.mxu0 0.0
        %1146 = vmatprep.subr.mxu0 0.0
        %1147 = vmatpush1.msra.mxu0 0.0
        %1148 = vmatprep.subr.mxu0 0.0
        %1149 = vmatpush1.msra.mxu0 0.0
        %1150 = vmatprep.subr.mxu0 0.0
        %1151 = vmatpush1.msra.mxu0 0.0
        %1152 = vmatprep.subr.mxu0 0.0
        %1153 = vmatpush1.msra.mxu0 0.0
        %1154 = vmatprep.subr.mxu0 0.0
        %1155 = vmatpush1.msra.mxu0 %v845
        %1156 = vmatprep.subr.mxu0 0.0
        %1157 = vmatpush1.msra.mxu0 %v840
        %1158 = vmatprep.subr.mxu0 0.0
        %1159 = vmatpush1.msra.mxu0 %v835
        %1160 = vmatprep.subr.mxu0 0.0
        %1161 = vmatpush1.msra.mxu0 %v830
        %1162 = vmatprep.subr.mxu0 0.0
        %1163 = vmatpush2.msra.mxu0 0.0
        %1164 = vmatprep.subr.mxu0 0.0
        %1165 = vmatpush2.msra.mxu0 0.0
        %1166 = vmatprep.subr.mxu0 0.0
        %1167 = vmatpush2.msra.mxu0 0.0
        %1168 = vmatprep.subr.mxu0 0.0
        %1169 = vmatpush2.msra.mxu0 0.0
        %1170 = vmatprep.subr.mxu0 0.0
        %1171 = vmatpush2.msra.mxu0 0.0
        %1172 = vmatprep.subr.mxu0 0.0
        %1173 = vmatpush2.msra.mxu0 0.0
        %1174 = vmatprep.subr.mxu0 0.0
        %1175 = vmatpush2.msra.mxu0 0.0
        %1176 = vmatprep.subr.mxu0 0.0
        %1177 = vmatpush2.msra.mxu0 0.0
        %1178 = vmatprep.subr.mxu0 0.0
        %1179 = vmatpush2.msra.mxu0 0.0
        %1180 = vmatprep.subr.mxu0 0.0
        %1181 = vmatpush2.msra.mxu0 0.0
        %1182 = vmatprep.subr.mxu0 0.0
        %1183 = vmatpush2.msra.mxu0 0.0
        %1184 = vmatprep.subr.mxu0 0.0
        %1185 = vmatpush2.msra.mxu0 0.0
        %1186 = vmatprep.subr.mxu0 0.0
        %1187 = vmatpush2.msra.mxu0 0.0
        %1188 = vmatprep.subr.mxu0 0.0
        %1189 = vmatpush2.msra.mxu0 0.0
        %1190 = vmatprep.subr.mxu0 0.0
        %1191 = vmatpush2.msra.mxu0 0.0
        %1192 = vmatprep.subr.mxu0 0.0
        %1193 = vmatpush2.msra.mxu0 0.0
        %1194 = vmatprep.mubr.f32.mxu0 0.0
        %1195 = vmatmul.mubr.f32.gmra.mxu0 %v1107
        %v1196 = vpop.f32.mrf.mxu0
        %v1197 = vadd.f32 %v1067, %v1196
        %v1198 = vpop.f32.mrf.mxu0
        %1199 = vmatprep.mubr.f32.mxu0 0.0
        %1200 = vmatmul.mubr.f32.gmra.mxu0 %v1110
        %v1201 = vpop.f32.mrf.mxu0
        %v1202 = vadd.f32 %v1072, %v1201
        %v1203 = vpop.f32.mrf.mxu0
        %1204 = vmatprep.mubr.f32.mxu0 0.0
        %1205 = vmatmul.mubr.f32.gmra.mxu0 %v1113
        %v1206 = vpop.f32.mrf.mxu0
        %v1207 = vadd.f32 %v1077, %v1206
        %v1208 = vpop.f32.mrf.mxu0
        %1209 = vmatprep.mubr.f32.mxu0 0.0
        %1210 = vmatmul.mubr.f32.gmra.mxu0 %v1116
        %v1211 = vpop.f32.mrf.mxu0
        %v1212 = vadd.f32 %v1082, %v1211
        %v1213 = vpop.f32.mrf.mxu0
        %1214 = vmatprep.mubr.f32.mxu0 0.0
        %1215 = vmatmul.mubr.f32.gmra.mxu0 %v1119
        %v1216 = vpop.f32.mrf.mxu0
        %v1217 = vadd.f32 %v1087, %v1216
        %v1218 = vpop.f32.mrf.mxu0
        %1219 = vmatprep.mubr.f32.mxu0 0.0
        %1220 = vmatmul.mubr.f32.gmra.mxu0 %v1122
        %v1221 = vpop.f32.mrf.mxu0
        %v1222 = vadd.f32 %v1092, %v1221
        %v1223 = vpop.f32.mrf.mxu0
        %1224 = vmatprep.mubr.f32.mxu0 0.0
        %1225 = vmatmul.mubr.f32.gmra.mxu0 %v1125
        %v1226 = vpop.f32.mrf.mxu0
        %v1227 = vadd.f32 %v1097, %v1226
        %v1228 = vpop.f32.mrf.mxu0
        %1229 = vmatprep.mubr.f32.mxu0 0.0
        %1230 = vmatmul.mubr.f32.gmra.mxu0 %v1128
        %v1231 = vpop.f32.mrf.mxu0
        %v1232 = vadd.f32 %v1102, %v1231
        %v1233 = vpop.f32.mrf.mxu0
        %1234 = vdwg.mxu0
        %v1235 = vld [vmem:[%s694] sm:$0xff]
        %v1236 = vld [vmem:[%s694 + $0x8] sm:$0xff]
        %v1237 = vld [vmem:[%s7] sm:$0xff]
        %v1238 = vld [vmem:[%s7 + $0x8] sm:$0xff]
        %v1239 = vld [vmem:[%s7 + $0x10] sm:$0xff]
        %v1240 = vld [vmem:[%s7 + $0x18] sm:$0xff]
        %v1241 = vld [vmem:[%s7 + $0x20] sm:$0xff]
        %v1242 = vld [vmem:[%s7 + $0x28] sm:$0xff]
        %v1243 = vld [vmem:[%s7 + $0x30] sm:$0xff]
        %v1244 = vld [vmem:[%s7 + $0x38] sm:$0xff]
        %v1245 = vld [vmem:[%s7 + $0x40] sm:$0xff]
        %v1246 = vld [vmem:[%s7 + $0x48] sm:$0xff]
        %v1247 = vld [vmem:[%s7 + $0x50] sm:$0xff]
        %v1248 = vld [vmem:[%s7 + $0x58] sm:$0xff]
        %v1249 = vld [vmem:[%s7 + $0x60] sm:$0xff]
        %v1250 = vld [vmem:[%s7 + $0x68] sm:$0xff]
        %v1251 = vld [vmem:[%s7 + $0x70] sm:$0xff]
        %v1252 = vld [vmem:[%s7 + $0x78] sm:$0xff]
        %v1253 = vld [vmem:[%s7 + $0x80] sm:$0xff]
        %v1254 = vld [vmem:[%s7 + $0x88] sm:$0xff]
        %v1255 = vld [vmem:[%s7 + $0x90] sm:$0xff]
        %v1256 = vld [vmem:[%s7 + $0x98] sm:$0xff]
        %v1257 = vld [vmem:[%s7 + $0xa0] sm:$0xff]
        %v1258 = vld [vmem:[%s7 + $0xa8] sm:$0xff]
        %v1259 = vld [vmem:[%s7 + $0xb0] sm:$0xff]
        %v1260 = vld [vmem:[%s7 + $0xb8] sm:$0xff]
        %v1261 = vld [vmem:[%s7 + $0xc0] sm:$0xff]
        %v1262 = vld [vmem:[%s7 + $0xc8] sm:$0xff]
        %v1263 = vld [vmem:[%s7 + $0xd0] sm:$0xff]
        %v1264 = vld [vmem:[%s7 + $0xd8] sm:$0xff]
        %v1265 = vld [vmem:[%s7 + $0xe0] sm:$0xff]
        %v1266 = vld [vmem:[%s7 + $0xe8] sm:$0xff]
        %v1267 = vld [vmem:[%s7 + $0xf0] sm:$0xff]
        %v1268 = vld [vmem:[%s7 + $0xf8] sm:$0xff]
        %1269 = vmatprep.subr.mxu0 0.0
        %1270 = vmatpush1.msra.mxu0 %v1252
        %1271 = vmatprep.subr.mxu0 0.0
        %1272 = vmatpush1.msra.mxu0 %v1251
        %1273 = vmatprep.subr.mxu0 0.0
        %1274 = vmatpush1.msra.mxu0 %v1250
        %1275 = vmatprep.subr.mxu0 0.0
        %1276 = vmatpush1.msra.mxu0 %v1249
        %1277 = vmatprep.subr.mxu0 0.0
        %1278 = vmatpush1.msra.mxu0 %v1248
        %1279 = vmatprep.subr.mxu0 0.0
        %1280 = vmatpush1.msra.mxu0 %v1247
        %1281 = vmatprep.subr.mxu0 0.0
        %1282 = vmatpush1.msra.mxu0 %v1246
        %1283 = vmatprep.subr.mxu0 0.0
        %1284 = vmatpush1.msra.mxu0 %v1245
        %1285 = vmatprep.subr.mxu0 0.0
        %1286 = vmatpush1.msra.mxu0 %v1244
        %1287 = vmatprep.subr.mxu0 0.0
        %1288 = vmatpush1.msra.mxu0 %v1243
        %1289 = vmatprep.subr.mxu0 0.0
        %1290 = vmatpush1.msra.mxu0 %v1242
        %1291 = vmatprep.subr.mxu0 0.0
        %1292 = vmatpush1.msra.mxu0 %v1241
        %1293 = vmatprep.subr.mxu0 0.0
        %1294 = vmatpush1.msra.mxu0 %v1240
        %1295 = vmatprep.subr.mxu0 0.0
        %1296 = vmatpush1.msra.mxu0 %v1239
        %1297 = vmatprep.subr.mxu0 0.0
        %1298 = vmatpush1.msra.mxu0 %v1238
        %1299 = vmatprep.subr.mxu0 0.0
        %1300 = vmatpush1.msra.mxu0 %v1237
        %1301 = vmatprep.subr.mxu0 0.0
        %1302 = vmatpush2.msra.mxu0 %v1268
        %1303 = vmatprep.subr.mxu0 0.0
        %1304 = vmatpush2.msra.mxu0 %v1267
        %1305 = vmatprep.subr.mxu0 0.0
        %1306 = vmatpush2.msra.mxu0 %v1266
        %1307 = vmatprep.subr.mxu0 0.0
        %1308 = vmatpush2.msra.mxu0 %v1265
        %1309 = vmatprep.subr.mxu0 0.0
        %1310 = vmatpush2.msra.mxu0 %v1264
        %1311 = vmatprep.subr.mxu0 0.0
        %1312 = vmatpush2.msra.mxu0 %v1263
        %1313 = vmatprep.subr.mxu0 0.0
        %1314 = vmatpush2.msra.mxu0 %v1262
        %1315 = vmatprep.subr.mxu0 0.0
        %1316 = vmatpush2.msra.mxu0 %v1261
        %1317 = vmatprep.subr.mxu0 0.0
        %1318 = vmatpush2.msra.mxu0 %v1260
        %1319 = vmatprep.subr.mxu0 0.0
        %1320 = vmatpush2.msra.mxu0 %v1259
        %1321 = vmatprep.subr.mxu0 0.0
        %1322 = vmatpush2.msra.mxu0 %v1258
        %1323 = vmatprep.subr.mxu0 0.0
        %1324 = vmatpush2.msra.mxu0 %v1257
        %1325 = vmatprep.subr.mxu0 0.0
        %1326 = vmatpush2.msra.mxu0 %v1256
        %1327 = vmatprep.subr.mxu0 0.0
        %1328 = vmatpush2.msra.mxu0 %v1255
        %1329 = vmatprep.subr.mxu0 0.0
        %1330 = vmatpush2.msra.mxu0 %v1254
        %1331 = vmatprep.subr.mxu0 0.0
        %1332 = vmatpush2.msra.mxu0 %v1253
        %1333 = vmatprep.mubr.f32.mxu0 %v1236
        %1334 = vmatmul.mubr.f32.gmra.mxu0 %v1235
        %v1335 = vpop.f32.mrf.mxu0
        %v1336 = vadd.f32 0.0, %v1335
        %v1337 = vpop.f32.mrf.mxu0
        %1338 = vdwg.mxu0
        %v1339 = vld [vmem:[%s699] sm:$0xff]
        %v1340 = vld [vmem:[%s699 + $0x8] sm:$0xff]
        %v1341 = vld [vmem:[%s699 + $0x10] sm:$0xff]
        %v1342 = vld [vmem:[%s699 + $0x18] sm:$0xff]
        %v1343 = vld [vmem:[%s699 + $0x20] sm:$0xff]
        %v1344 = vld [vmem:[%s699 + $0x28] sm:$0xff]
        %v1345 = vld [vmem:[%s699 + $0x30] sm:$0xff]
        %v1346 = vld [vmem:[%s699 + $0x38] sm:$0xff]
        %vm1347 = vcmask 64512
        %v1349 = vsel %vm1347, %v1339, 0
        %v1352 = vsel %vm1347, %v1340, 0
        %v1355 = vsel %vm1347, %v1341, 0
        %v1358 = vsel %vm1347, %v1342, 0
        %v1361 = vsel %vm1347, %v1343, 0
        %v1364 = vsel %vm1347, %v1344, 0
        %v1367 = vsel %vm1347, %v1345, 0
        %v1370 = vsel %vm1347, %v1346, 0
        %1372 = vmatprep.subr.mxu0 0.0
        %1373 = vmatpush1.msra.mxu0 0.0
        %1374 = vmatprep.subr.mxu0 0.0
        %1375 = vmatpush1.msra.mxu0 0.0
        %1376 = vmatprep.subr.mxu0 0.0
        %1377 = vmatpush1.msra.mxu0 0.0
        %1378 = vmatprep.subr.mxu0 0.0
        %1379 = vmatpush1.msra.mxu0 0.0
        %1380 = vmatprep.subr.mxu0 0.0
        %1381 = vmatpush1.msra.mxu0 0.0
        %1382 = vmatprep.subr.mxu0 0.0
        %1383 = vmatpush1.msra.mxu0 0.0
        %1384 = vmatprep.subr.mxu0 0.0
        %1385 = vmatpush1.msra.mxu0 0.0
        %1386 = vmatprep.subr.mxu0 0.0
        %1387 = vmatpush1.msra.mxu0 0.0
        %1388 = vmatprep.subr.mxu0 0.0
        %1389 = vmatpush1.msra.mxu0 0.0
        %1390 = vmatprep.subr.mxu0 0.0
        %1391 = vmatpush1.msra.mxu0 0.0
        %1392 = vmatprep.subr.mxu0 0.0
        %1393 = vmatpush1.msra.mxu0 0.0
        %1394 = vmatprep.subr.mxu0 0.0
        %1395 = vmatpush1.msra.mxu0 0.0
        %1396 = vmatprep.subr.mxu0 0.0
        %1397 = vmatpush1.msra.mxu0 0.0
        %1398 = vmatprep.subr.mxu0 0.0
        %1399 = vmatpush1.msra.mxu0 0.0
        %1400 = vmatprep.subr.mxu0 0.0
        %1401 = vmatpush1.msra.mxu0 0.0
        %1402 = vmatprep.subr.mxu0 0.0
        %1403 = vmatpush1.msra.mxu0 %v1336
        %1404 = vmatprep.subr.mxu0 0.0
        %1405 = vmatpush2.msra.mxu0 0.0
        %1406 = vmatprep.subr.mxu0 0.0
        %1407 = vmatpush2.msra.mxu0 0.0
        %1408 = vmatprep.subr.mxu0 0.0
        %1409 = vmatpush2.msra.mxu0 0.0
        %1410 = vmatprep.subr.mxu0 0.0
        %1411 = vmatpush2.msra.mxu0 0.0
        %1412 = vmatprep.subr.mxu0 0.0
        %1413 = vmatpush2.msra.mxu0 0.0
        %1414 = vmatprep.subr.mxu0 0.0
        %1415 = vmatpush2.msra.mxu0 0.0
        %1416 = vmatprep.subr.mxu0 0.0
        %1417 = vmatpush2.msra.mxu0 0.0
        %1418 = vmatprep.subr.mxu0 0.0
        %1419 = vmatpush2.msra.mxu0 0.0
        %1420 = vmatprep.subr.mxu0 0.0
        %1421 = vmatpush2.msra.mxu0 0.0
        %1422 = vmatprep.subr.mxu0 0.0
        %1423 = vmatpush2.msra.mxu0 0.0
        %1424 = vmatprep.subr.mxu0 0.0
        %1425 = vmatpush2.msra.mxu0 0.0
        %1426 = vmatprep.subr.mxu0 0.0
        %1427 = vmatpush2.msra.mxu0 0.0
        %1428 = vmatprep.subr.mxu0 0.0
        %1429 = vmatpush2.msra.mxu0 0.0
        %1430 = vmatprep.subr.mxu0 0.0
        %1431 = vmatpush2.msra.mxu0 0.0
        %1432 = vmatprep.subr.mxu0 0.0
        %1433 = vmatpush2.msra.mxu0 0.0
        %1434 = vmatprep.subr.mxu0 0.0
        %1435 = vmatpush2.msra.mxu0 0.0
        %1436 = vmatprep.mubr.f32.mxu0 0.0
        %1437 = vmatmul.mubr.f32.gmra.mxu0 %v1349
        %v1438 = vpop.f32.mrf.mxu0
        %v1439 = vadd.f32 0.0, %v1438
        %v1440 = vpop.f32.mrf.mxu0
        %1441 = vmatprep.mubr.f32.mxu0 0.0
        %1442 = vmatmul.mubr.f32.gmra.mxu0 %v1352
        %v1443 = vpop.f32.mrf.mxu0
        %v1444 = vadd.f32 0.0, %v1443
        %v1445 = vpop.f32.mrf.mxu0
        %1446 = vmatprep.mubr.f32.mxu0 0.0
        %1447 = vmatmul.mubr.f32.gmra.mxu0 %v1355
        %v1448 = vpop.f32.mrf.mxu0
        %v1449 = vadd.f32 0.0, %v1448
        %v1450 = vpop.f32.mrf.mxu0
        %1451 = vmatprep.mubr.f32.mxu0 0.0
        %1452 = vmatmul.mubr.f32.gmra.mxu0 %v1358
        %v1453 = vpop.f32.mrf.mxu0
        %v1454 = vadd.f32 0.0, %v1453
        %v1455 = vpop.f32.mrf.mxu0
        %1456 = vmatprep.mubr.f32.mxu0 0.0
        %1457 = vmatmul.mubr.f32.gmra.mxu0 %v1361
        %v1458 = vpop.f32.mrf.mxu0
        %v1459 = vadd.f32 0.0, %v1458
        %v1460 = vpop.f32.mrf.mxu0
        %1461 = vmatprep.mubr.f32.mxu0 0.0
        %1462 = vmatmul.mubr.f32.gmra.mxu0 %v1364
        %v1463 = vpop.f32.mrf.mxu0
        %v1464 = vadd.f32 0.0, %v1463
        %v1465 = vpop.f32.mrf.mxu0
        %1466 = vmatprep.mubr.f32.mxu0 0.0
        %1467 = vmatmul.mubr.f32.gmra.mxu0 %v1367
        %v1468 = vpop.f32.mrf.mxu0
        %v1469 = vadd.f32 0.0, %v1468
        %v1470 = vpop.f32.mrf.mxu0
        %1471 = vmatprep.mubr.f32.mxu0 0.0
        %1472 = vmatmul.mubr.f32.gmra.mxu0 %v1370
        %v1473 = vpop.f32.mrf.mxu0
        %v1474 = vadd.f32 0.0, %v1473
        %v1475 = vpop.f32.mrf.mxu0
        %1476 = vdwg.mxu0
        %v1477 = vadd.f32 %v1197, %v1439
        %v1478 = vadd.f32 %v1202, %v1444
        %v1479 = vadd.f32 %v1207, %v1449
        %v1480 = vadd.f32 %v1212, %v1454
        %v1481 = vadd.f32 %v1217, %v1459
        %v1482 = vadd.f32 %v1222, %v1464
        %v1483 = vadd.f32 %v1227, %v1469
        %v1484 = vadd.f32 %v1232, %v1474
        %v1485 = vld [vmem:[%s705] sm:$0xff]
        %v1486 = vld [vmem:[%s10] sm:$0xff]
        %v1487 = vld [vmem:[%s10 + $0x8] sm:$0xff]
        %v1488 = vld [vmem:[%s10 + $0x10] sm:$0xff]
        %v1489 = vld [vmem:[%s10 + $0x18] sm:$0xff]
        %v1490 = vld [vmem:[%s10 + $0x20] sm:$0xff]
        %v1491 = vld [vmem:[%s10 + $0x28] sm:$0xff]
        %v1492 = vld [vmem:[%s10 + $0x30] sm:$0xff]
        %v1493 = vld [vmem:[%s10 + $0x38] sm:$0xff]
        %v1494 = vld [vmem:[%s10 + $0x40] sm:$0xff]
        %v1495 = vld [vmem:[%s10 + $0x48] sm:$0xff]
        %v1496 = vld [vmem:[%s10 + $0x50] sm:$0xff]
        %v1497 = vld [vmem:[%s10 + $0x58] sm:$0xff]
        %v1498 = vld [vmem:[%s10 + $0x60] sm:$0xff]
        %v1499 = vld [vmem:[%s10 + $0x68] sm:$0xff]
        %v1500 = vld [vmem:[%s10 + $0x70] sm:$0xff]
        %v1501 = vld [vmem:[%s10 + $0x78] sm:$0xff]
        %v1502 = vld [vmem:[%s10 + $0x80] sm:$0xff]
        %v1503 = vld [vmem:[%s10 + $0x88] sm:$0xff]
        %v1504 = vld [vmem:[%s10 + $0x90] sm:$0xff]
        %v1505 = vld [vmem:[%s10 + $0x98] sm:$0xff]
        %v1506 = vld [vmem:[%s10 + $0xa0] sm:$0xff]
        %v1507 = vld [vmem:[%s10 + $0xa8] sm:$0xff]
        %v1508 = vld [vmem:[%s10 + $0xb0] sm:$0xff]
        %v1509 = vld [vmem:[%s10 + $0xb8] sm:$0xff]
        %v1510 = vld [vmem:[%s10 + $0xc0] sm:$0xff]
        %v1511 = vld [vmem:[%s10 + $0xc8] sm:$0xff]
        %v1512 = vld [vmem:[%s10 + $0xd0] sm:$0xff]
        %v1513 = vld [vmem:[%s10 + $0xd8] sm:$0xff]
        %v1514 = vld [vmem:[%s10 + $0xe0] sm:$0xff]
        %v1515 = vld [vmem:[%s10 + $0xe8] sm:$0xff]
        %v1516 = vld [vmem:[%s10 + $0xf0] sm:$0xff]
        %v1517 = vld [vmem:[%s10 + $0xf8] sm:$0xff]
        %v1519 = vcombine.high %v1485, %v1485
        %1521 = vmatprep.subr.mxu0 0.0
        %1522 = vmatpush1.msra.mxu0 %v1501
        %1523 = vmatprep.subr.mxu0 0.0
        %1524 = vmatpush1.msra.mxu0 %v1500
        %1525 = vmatprep.subr.mxu0 0.0
        %1526 = vmatpush1.msra.mxu0 %v1499
        %1527 = vmatprep.subr.mxu0 0.0
        %1528 = vmatpush1.msra.mxu0 %v1498
        %1529 = vmatprep.subr.mxu0 0.0
        %1530 = vmatpush1.msra.mxu0 %v1497
        %1531 = vmatprep.subr.mxu0 0.0
        %1532 = vmatpush1.msra.mxu0 %v1496
        %1533 = vmatprep.subr.mxu0 0.0
        %1534 = vmatpush1.msra.mxu0 %v1495
        %1535 = vmatprep.subr.mxu0 0.0
        %1536 = vmatpush1.msra.mxu0 %v1494
        %1537 = vmatprep.subr.mxu0 0.0
        %1538 = vmatpush1.msra.mxu0 %v1493
        %1539 = vmatprep.subr.mxu0 0.0
        %1540 = vmatpush1.msra.mxu0 %v1492
        %1541 = vmatprep.subr.mxu0 0.0
        %1542 = vmatpush1.msra.mxu0 %v1491
        %1543 = vmatprep.subr.mxu0 0.0
        %1544 = vmatpush1.msra.mxu0 %v1490
        %1545 = vmatprep.subr.mxu0 0.0
        %1546 = vmatpush1.msra.mxu0 %v1489
        %1547 = vmatprep.subr.mxu0 0.0
        %1548 = vmatpush1.msra.mxu0 %v1488
        %1549 = vmatprep.subr.mxu0 0.0
        %1550 = vmatpush1.msra.mxu0 %v1487
        %1551 = vmatprep.subr.mxu0 0.0
        %1552 = vmatpush1.msra.mxu0 %v1486
        %1553 = vmatprep.subr.mxu0 0.0
        %1554 = vmatpush2.msra.mxu0 %v1517
        %1555 = vmatprep.subr.mxu0 0.0
        %1556 = vmatpush2.msra.mxu0 %v1516
        %1557 = vmatprep.subr.mxu0 0.0
        %1558 = vmatpush2.msra.mxu0 %v1515
        %1559 = vmatprep.subr.mxu0 0.0
        %1560 = vmatpush2.msra.mxu0 %v1514
        %1561 = vmatprep.subr.mxu0 0.0
        %1562 = vmatpush2.msra.mxu0 %v1513
        %1563 = vmatprep.subr.mxu0 0.0
        %1564 = vmatpush2.msra.mxu0 %v1512
        %1565 = vmatprep.subr.mxu0 0.0
        %1566 = vmatpush2.msra.mxu0 %v1511
        %1567 = vmatprep.subr.mxu0 0.0
        %1568 = vmatpush2.msra.mxu0 %v1510
        %1569 = vmatprep.subr.mxu0 0.0
        %1570 = vmatpush2.msra.mxu0 %v1509
        %1571 = vmatprep.subr.mxu0 0.0
        %1572 = vmatpush2.msra.mxu0 %v1508
        %1573 = vmatprep.subr.mxu0 0.0
        %1574 = vmatpush2.msra.mxu0 %v1507
        %1575 = vmatprep.subr.mxu0 0.0
        %1576 = vmatpush2.msra.mxu0 %v1506
        %1577 = vmatprep.subr.mxu0 0.0
        %1578 = vmatpush2.msra.mxu0 %v1505
        %1579 = vmatprep.subr.mxu0 0.0
        %1580 = vmatpush2.msra.mxu0 %v1504
        %1581 = vmatprep.subr.mxu0 0.0
        %1582 = vmatpush2.msra.mxu0 %v1503
        %1583 = vmatprep.subr.mxu0 0.0
        %1584 = vmatpush2.msra.mxu0 %v1502
        %1585 = vmatprep.mubr.f32.mxu0 %v1519
        %1586 = vmatmul.mubr.f32.gmra.mxu0 %v1485
        %v1587 = vpop.f32.mrf.mxu0
        %v1588 = vadd.f32 0.0, %v1587
        %v1589 = vpop.f32.mrf.mxu0
        %1590 = vdwg.mxu0
        %v1591 = vld [vmem:[%s710] sm:$0xff]
        %v1592 = vld [vmem:[%s710 + $0x8] sm:$0xff]
        %v1593 = vld [vmem:[%s710 + $0x10] sm:$0xff]
        %v1594 = vld [vmem:[%s710 + $0x18] sm:$0xff]
        %v1595 = vld [vmem:[%s710 + $0x20] sm:$0xff]
        %v1596 = vld [vmem:[%s710 + $0x28] sm:$0xff]
        %v1597 = vld [vmem:[%s710 + $0x30] sm:$0xff]
        %v1598 = vld [vmem:[%s710 + $0x38] sm:$0xff]
        %vm1599 = vcmask 31744
        %v1601 = vsel %vm1599, %v1591, 0
        %v1604 = vsel %vm1599, %v1592, 0
        %v1607 = vsel %vm1599, %v1593, 0
        %v1610 = vsel %vm1599, %v1594, 0
        %v1613 = vsel %vm1599, %v1595, 0
        %v1616 = vsel %vm1599, %v1596, 0
        %v1619 = vsel %vm1599, %v1597, 0
        %v1622 = vsel %vm1599, %v1598, 0
        %vm1624 = vcmask 1043456
        %v1626 = vsel %vm1624, %v1588, 0
        %1628 = vmatprep.subr.mxu0 0.0
        %1629 = vmatpush1.msra.mxu0 0.0
        %1630 = vmatprep.subr.mxu0 0.0
        %1631 = vmatpush1.msra.mxu0 0.0
        %1632 = vmatprep.subr.mxu0 0.0
        %1633 = vmatpush1.msra.mxu0 0.0
        %1634 = vmatprep.subr.mxu0 0.0
        %1635 = vmatpush1.msra.mxu0 0.0
        %1636 = vmatprep.subr.mxu0 0.0
        %1637 = vmatpush1.msra.mxu0 0.0
        %1638 = vmatprep.subr.mxu0 0.0
        %1639 = vmatpush1.msra.mxu0 0.0
        %1640 = vmatprep.subr.mxu0 0.0
        %1641 = vmatpush1.msra.mxu0 0.0
        %1642 = vmatprep.subr.mxu0 0.0
        %1643 = vmatpush1.msra.mxu0 0.0
        %1644 = vmatprep.subr.mxu0 0.0
        %1645 = vmatpush1.msra.mxu0 0.0
        %1646 = vmatprep.subr.mxu0 0.0
        %1647 = vmatpush1.msra.mxu0 0.0
        %1648 = vmatprep.subr.mxu0 0.0
        %1649 = vmatpush1.msra.mxu0 0.0
        %1650 = vmatprep.subr.mxu0 0.0
        %1651 = vmatpush1.msra.mxu0 0.0
        %1652 = vmatprep.subr.mxu0 0.0
        %1653 = vmatpush1.msra.mxu0 0.0
        %1654 = vmatprep.subr.mxu0 0.0
        %1655 = vmatpush1.msra.mxu0 0.0
        %1656 = vmatprep.subr.mxu0 0.0
        %1657 = vmatpush1.msra.mxu0 0.0
        %1658 = vmatprep.subr.mxu0 0.0
        %1659 = vmatpush1.msra.mxu0 %v1626
        %1660 = vmatprep.subr.mxu0 0.0
        %1661 = vmatpush2.msra.mxu0 0.0
        %1662 = vmatprep.subr.mxu0 0.0
        %1663 = vmatpush2.msra.mxu0 0.0
        %1664 = vmatprep.subr.mxu0 0.0
        %1665 = vmatpush2.msra.mxu0 0.0
        %1666 = vmatprep.subr.mxu0 0.0
        %1667 = vmatpush2.msra.mxu0 0.0
        %1668 = vmatprep.subr.mxu0 0.0
        %1669 = vmatpush2.msra.mxu0 0.0
        %1670 = vmatprep.subr.mxu0 0.0
        %1671 = vmatpush2.msra.mxu0 0.0
        %1672 = vmatprep.subr.mxu0 0.0
        %1673 = vmatpush2.msra.mxu0 0.0
        %1674 = vmatprep.subr.mxu0 0.0
        %1675 = vmatpush2.msra.mxu0 0.0
        %1676 = vmatprep.subr.mxu0 0.0
        %1677 = vmatpush2.msra.mxu0 0.0
        %1678 = vmatprep.subr.mxu0 0.0
        %1679 = vmatpush2.msra.mxu0 0.0
        %1680 = vmatprep.subr.mxu0 0.0
        %1681 = vmatpush2.msra.mxu0 0.0
        %1682 = vmatprep.subr.mxu0 0.0
        %1683 = vmatpush2.msra.mxu0 0.0
        %1684 = vmatprep.subr.mxu0 0.0
        %1685 = vmatpush2.msra.mxu0 0.0
        %1686 = vmatprep.subr.mxu0 0.0
        %1687 = vmatpush2.msra.mxu0 0.0
        %1688 = vmatprep.subr.mxu0 0.0
        %1689 = vmatpush2.msra.mxu0 0.0
        %1690 = vmatprep.subr.mxu0 0.0
        %1691 = vmatpush2.msra.mxu0 0.0
        %1692 = vmatprep.mubr.f32.mxu0 0.0
        %1693 = vmatmul.mubr.f32.gmra.mxu0 %v1601
        %v1694 = vpop.f32.mrf.mxu0
        %v1695 = vadd.f32 0.0, %v1694
        %v1696 = vpop.f32.mrf.mxu0
        %1697 = vmatprep.mubr.f32.mxu0 0.0
        %1698 = vmatmul.mubr.f32.gmra.mxu0 %v1604
        %v1699 = vpop.f32.mrf.mxu0
        %v1700 = vadd.f32 0.0, %v1699
        %v1701 = vpop.f32.mrf.mxu0
        %1702 = vmatprep.mubr.f32.mxu0 0.0
        %1703 = vmatmul.mubr.f32.gmra.mxu0 %v1607
        %v1704 = vpop.f32.mrf.mxu0
        %v1705 = vadd.f32 0.0, %v1704
        %v1706 = vpop.f32.mrf.mxu0
        %1707 = vmatprep.mubr.f32.mxu0 0.0
        %1708 = vmatmul.mubr.f32.gmra.mxu0 %v1610
        %v1709 = vpop.f32.mrf.mxu0
        %v1710 = vadd.f32 0.0, %v1709
        %v1711 = vpop.f32.mrf.mxu0
        %1712 = vmatprep.mubr.f32.mxu0 0.0
        %1713 = vmatmul.mubr.f32.gmra.mxu0 %v1613
        %v1714 = vpop.f32.mrf.mxu0
        %v1715 = vadd.f32 0.0, %v1714
        %v1716 = vpop.f32.mrf.mxu0
        %1717 = vmatprep.mubr.f32.mxu0 0.0
        %1718 = vmatmul.mubr.f32.gmra.mxu0 %v1616
        %v1719 = vpop.f32.mrf.mxu0
        %v1720 = vadd.f32 0.0, %v1719
        %v1721 = vpop.f32.mrf.mxu0
        %1722 = vmatprep.mubr.f32.mxu0 0.0
        %1723 = vmatmul.mubr.f32.gmra.mxu0 %v1619
        %v1724 = vpop.f32.mrf.mxu0
        %v1725 = vadd.f32 0.0, %v1724
        %v1726 = vpop.f32.mrf.mxu0
        %1727 = vmatprep.mubr.f32.mxu0 0.0
        %1728 = vmatmul.mubr.f32.gmra.mxu0 %v1622
        %v1729 = vpop.f32.mrf.mxu0
        %v1730 = vadd.f32 0.0, %v1729
        %v1731 = vpop.f32.mrf.mxu0
        %1732 = vdwg.mxu0
        %v1733 = vadd.f32 %v1477, %v1695
        %v1734 = vadd.f32 %v1478, %v1700
        %v1735 = vadd.f32 %v1479, %v1705
        %v1736 = vadd.f32 %v1480, %v1710
        %v1737 = vadd.f32 %v1481, %v1715
        %v1738 = vadd.f32 %v1482, %v1720
        %v1739 = vadd.f32 %v1483, %v1725
        %v1740 = vadd.f32 %v1484, %v1730
        %v1741 = vld [vmem:[%s715] sm:$0x3]
        %v1742 = vld [vmem:[%s13] sm:$0xff]
        %v1743 = vld [vmem:[%s13 + $0x8] sm:$0xff]
        %v1744 = vld [vmem:[%s13 + $0x10] sm:$0xff]
        %v1745 = vld [vmem:[%s13 + $0x18] sm:$0xff]
        %v1746 = vld [vmem:[%s13 + $0x20] sm:$0xff]
        %v1747 = vld [vmem:[%s13 + $0x28] sm:$0xff]
        %v1748 = vld [vmem:[%s13 + $0x30] sm:$0xff]
        %v1749 = vld [vmem:[%s13 + $0x38] sm:$0xff]
        %v1750 = vld [vmem:[%s13 + $0x40] sm:$0xff]
        %v1751 = vld [vmem:[%s13 + $0x48] sm:$0xff]
        %v1752 = vld [vmem:[%s13 + $0x50] sm:$0xff]
        %v1753 = vld [vmem:[%s13 + $0x58] sm:$0xff]
        %v1754 = vld [vmem:[%s13 + $0x60] sm:$0xff]
        %v1755 = vld [vmem:[%s13 + $0x68] sm:$0xff]
        %v1756 = vld [vmem:[%s13 + $0x70] sm:$0xff]
        %v1757 = vld [vmem:[%s13 + $0x78] sm:$0xff]
        %1758 = vmatprep.subr.mxu0 0.0
        %1759 = vmatpush1.msra.mxu0 %v1757
        %1760 = vmatprep.subr.mxu0 0.0
        %1761 = vmatpush1.msra.mxu0 %v1756
        %1762 = vmatprep.subr.mxu0 0.0
        %1763 = vmatpush1.msra.mxu0 %v1755
        %1764 = vmatprep.subr.mxu0 0.0
        %1765 = vmatpush1.msra.mxu0 %v1754
        %1766 = vmatprep.subr.mxu0 0.0
        %1767 = vmatpush1.msra.mxu0 %v1753
        %1768 = vmatprep.subr.mxu0 0.0
        %1769 = vmatpush1.msra.mxu0 %v1752
        %1770 = vmatprep.subr.mxu0 0.0
        %1771 = vmatpush1.msra.mxu0 %v1751
        %1772 = vmatprep.subr.mxu0 0.0
        %1773 = vmatpush1.msra.mxu0 %v1750
        %1774 = vmatprep.subr.mxu0 0.0
        %1775 = vmatpush1.msra.mxu0 %v1749
        %1776 = vmatprep.subr.mxu0 0.0
        %1777 = vmatpush1.msra.mxu0 %v1748
        %1778 = vmatprep.subr.mxu0 0.0
        %1779 = vmatpush1.msra.mxu0 %v1747
        %1780 = vmatprep.subr.mxu0 0.0
        %1781 = vmatpush1.msra.mxu0 %v1746
        %1782 = vmatprep.subr.mxu0 0.0
        %1783 = vmatpush1.msra.mxu0 %v1745
        %1784 = vmatprep.subr.mxu0 0.0
        %1785 = vmatpush1.msra.mxu0 %v1744
        %1786 = vmatprep.subr.mxu0 0.0
        %1787 = vmatpush1.msra.mxu0 %v1743
        %1788 = vmatprep.subr.mxu0 0.0
        %1789 = vmatpush1.msra.mxu0 %v1742
        %1790 = vmatprep.subr.mxu0 0.0
        %1791 = vmatpush2.msra.mxu0 0.0
        %1792 = vmatprep.subr.mxu0 0.0
        %1793 = vmatpush2.msra.mxu0 0.0
        %1794 = vmatprep.subr.mxu0 0.0
        %1795 = vmatpush2.msra.mxu0 0.0
        %1796 = vmatprep.subr.mxu0 0.0
        %1797 = vmatpush2.msra.mxu0 0.0
        %1798 = vmatprep.subr.mxu0 0.0
        %1799 = vmatpush2.msra.mxu0 0.0
        %1800 = vmatprep.subr.mxu0 0.0
        %1801 = vmatpush2.msra.mxu0 0.0
        %1802 = vmatprep.subr.mxu0 0.0
        %1803 = vmatpush2.msra.mxu0 0.0
        %1804 = vmatprep.subr.mxu0 0.0
        %1805 = vmatpush2.msra.mxu0 0.0
        %1806 = vmatprep.subr.mxu0 0.0
        %1807 = vmatpush2.msra.mxu0 0.0
        %1808 = vmatprep.subr.mxu0 0.0
        %1809 = vmatpush2.msra.mxu0 0.0
        %1810 = vmatprep.subr.mxu0 0.0
        %1811 = vmatpush2.msra.mxu0 0.0
        %1812 = vmatprep.subr.mxu0 0.0
        %1813 = vmatpush2.msra.mxu0 0.0
        %1814 = vmatprep.subr.mxu0 0.0
        %1815 = vmatpush2.msra.mxu0 0.0
        %1816 = vmatprep.subr.mxu0 0.0
        %1817 = vmatpush2.msra.mxu0 0.0
        %1818 = vmatprep.subr.mxu0 0.0
        %1819 = vmatpush2.msra.mxu0 0.0
        %1820 = vmatprep.subr.mxu0 0.0
        %1821 = vmatpush2.msra.mxu0 0.0
        %1822 = vmatprep.mubr.f32.mxu0 0.0
        %1823 = vmatmul.mubr.f32.gmra.mxu0 %v1741
        %v1824 = vpop.f32.mrf.mxu0
        %v1825 = vadd.f32 0.0, %v1824
        %v1826 = vpop.f32.mrf.mxu0
        %1827 = vdwg.mxu0
        %v1828 = vld [vmem:[%s720] sm:$0xff]
        %v1829 = vld [vmem:[%s720 + $0x8] sm:$0xff]
        %v1830 = vld [vmem:[%s720 + $0x10] sm:$0xff]
        %v1831 = vld [vmem:[%s720 + $0x18] sm:$0xff]
        %v1832 = vld [vmem:[%s720 + $0x20] sm:$0xff]
        %v1833 = vld [vmem:[%s720 + $0x28] sm:$0xff]
        %v1834 = vld [vmem:[%s720 + $0x30] sm:$0xff]
        %v1835 = vld [vmem:[%s720 + $0x38] sm:$0xff]
        %vm1836 = vcmask 15360
        %v1838 = vsel %vm1836, %v1828, 0
        %v1841 = vsel %vm1836, %v1829, 0
        %v1844 = vsel %vm1836, %v1830, 0
        %v1847 = vsel %vm1836, %v1831, 0
        %v1850 = vsel %vm1836, %v1832, 0
        %v1853 = vsel %vm1836, %v1833, 0
        %v1856 = vsel %vm1836, %v1834, 0
        %v1859 = vsel %vm1836, %v1835, 0
        %vm1861 = vcmask 1041408
        %v1863 = vsel %vm1861, %v1825, 0
        %1865 = vmatprep.subr.mxu0 0.0
        %1866 = vmatpush1.msra.mxu0 0.0
        %1867 = vmatprep.subr.mxu0 0.0
        %1868 = vmatpush1.msra.mxu0 0.0
        %1869 = vmatprep.subr.mxu0 0.0
        %1870 = vmatpush1.msra.mxu0 0.0
        %1871 = vmatprep.subr.mxu0 0.0
        %1872 = vmatpush1.msra.mxu0 0.0
        %1873 = vmatprep.subr.mxu0 0.0
        %1874 = vmatpush1.msra.mxu0 0.0
        %1875 = vmatprep.subr.mxu0 0.0
        %1876 = vmatpush1.msra.mxu0 0.0
        %1877 = vmatprep.subr.mxu0 0.0
        %1878 = vmatpush1.msra.mxu0 0.0
        %1879 = vmatprep.subr.mxu0 0.0
        %1880 = vmatpush1.msra.mxu0 0.0
        %1881 = vmatprep.subr.mxu0 0.0
        %1882 = vmatpush1.msra.mxu0 0.0
        %1883 = vmatprep.subr.mxu0 0.0
        %1884 = vmatpush1.msra.mxu0 0.0
        %1885 = vmatprep.subr.mxu0 0.0
        %1886 = vmatpush1.msra.mxu0 0.0
        %1887 = vmatprep.subr.mxu0 0.0
        %1888 = vmatpush1.msra.mxu0 0.0
        %1889 = vmatprep.subr.mxu0 0.0
        %1890 = vmatpush1.msra.mxu0 0.0
        %1891 = vmatprep.subr.mxu0 0.0
        %1892 = vmatpush1.msra.mxu0 0.0
        %1893 = vmatprep.subr.mxu0 0.0
        %1894 = vmatpush1.msra.mxu0 0.0
        %1895 = vmatprep.subr.mxu0 0.0
        %1896 = vmatpush1.msra.mxu0 %v1863
        %1897 = vmatprep.subr.mxu0 0.0
        %1898 = vmatpush2.msra.mxu0 0.0
        %1899 = vmatprep.subr.mxu0 0.0
        %1900 = vmatpush2.msra.mxu0 0.0
        %1901 = vmatprep.subr.mxu0 0.0
        %1902 = vmatpush2.msra.mxu0 0.0
        %1903 = vmatprep.subr.mxu0 0.0
        %1904 = vmatpush2.msra.mxu0 0.0
        %1905 = vmatprep.subr.mxu0 0.0
        %1906 = vmatpush2.msra.mxu0 0.0
        %1907 = vmatprep.subr.mxu0 0.0
        %1908 = vmatpush2.msra.mxu0 0.0
        %1909 = vmatprep.subr.mxu0 0.0
        %1910 = vmatpush2.msra.mxu0 0.0
        %1911 = vmatprep.subr.mxu0 0.0
        %1912 = vmatpush2.msra.mxu0 0.0
        %1913 = vmatprep.subr.mxu0 0.0
        %1914 = vmatpush2.msra.mxu0 0.0
        %1915 = vmatprep.subr.mxu0 0.0
        %1916 = vmatpush2.msra.mxu0 0.0
        %1917 = vmatprep.subr.mxu0 0.0
        %1918 = vmatpush2.msra.mxu0 0.0
        %1919 = vmatprep.subr.mxu0 0.0
        %1920 = vmatpush2.msra.mxu0 0.0
        %1921 = vmatprep.subr.mxu0 0.0
        %1922 = vmatpush2.msra.mxu0 0.0
        %1923 = vmatprep.subr.mxu0 0.0
        %1924 = vmatpush2.msra.mxu0 0.0
        %1925 = vmatprep.subr.mxu0 0.0
        %1926 = vmatpush2.msra.mxu0 0.0
        %1927 = vmatprep.subr.mxu0 0.0
        %1928 = vmatpush2.msra.mxu0 0.0
        %1929 = vmatprep.mubr.f32.mxu0 0.0
        %1930 = vmatmul.mubr.f32.gmra.mxu0 %v1838
        %v1931 = vpop.f32.mrf.mxu0
        %v1932 = vadd.f32 0.0, %v1931
        %v1933 = vpop.f32.mrf.mxu0
        %1934 = vmatprep.mubr.f32.mxu0 0.0
        %1935 = vmatmul.mubr.f32.gmra.mxu0 %v1841
        %v1936 = vpop.f32.mrf.mxu0
        %v1937 = vadd.f32 0.0, %v1936
        %v1938 = vpop.f32.mrf.mxu0
        %1939 = vmatprep.mubr.f32.mxu0 0.0
        %1940 = vmatmul.mubr.f32.gmra.mxu0 %v1844
        %v1941 = vpop.f32.mrf.mxu0
        %v1942 = vadd.f32 0.0, %v1941
        %v1943 = vpop.f32.mrf.mxu0
        %1944 = vmatprep.mubr.f32.mxu0 0.0
        %1945 = vmatmul.mubr.f32.gmra.mxu0 %v1847
        %v1946 = vpop.f32.mrf.mxu0
        %v1947 = vadd.f32 0.0, %v1946
        %v1948 = vpop.f32.mrf.mxu0
        %1949 = vmatprep.mubr.f32.mxu0 0.0
        %1950 = vmatmul.mubr.f32.gmra.mxu0 %v1850
        %v1951 = vpop.f32.mrf.mxu0
        %v1952 = vadd.f32 0.0, %v1951
        %v1953 = vpop.f32.mrf.mxu0
        %1954 = vmatprep.mubr.f32.mxu0 0.0
        %1955 = vmatmul.mubr.f32.gmra.mxu0 %v1853
        %v1956 = vpop.f32.mrf.mxu0
        %v1957 = vadd.f32 0.0, %v1956
        %v1958 = vpop.f32.mrf.mxu0
        %1959 = vmatprep.mubr.f32.mxu0 0.0
        %1960 = vmatmul.mubr.f32.gmra.mxu0 %v1856
        %v1961 = vpop.f32.mrf.mxu0
        %v1962 = vadd.f32 0.0, %v1961
        %v1963 = vpop.f32.mrf.mxu0
        %1964 = vmatprep.mubr.f32.mxu0 0.0
        %1965 = vmatmul.mubr.f32.gmra.mxu0 %v1859
        %v1966 = vpop.f32.mrf.mxu0
        %v1967 = vadd.f32 0.0, %v1966
        %v1968 = vpop.f32.mrf.mxu0
        %1969 = vdwg.mxu0
        %v1970 = vadd.f32 %v1733, %v1932
        %v1971 = vadd.f32 %v1734, %v1937
        %v1972 = vadd.f32 %v1735, %v1942
        %v1973 = vadd.f32 %v1736, %v1947
        %v1974 = vadd.f32 %v1737, %v1952
        %v1975 = vadd.f32 %v1738, %v1957
        %v1976 = vadd.f32 %v1739, %v1962
        %v1977 = vadd.f32 %v1740, %v1967
        %s1978 = sld [smem:[#allocation2]]
        %v1979 = vstv %s1978
        %v1980 = vadd.f32 %v1970, %v1979
        %v1981 = vadd.f32 %v1971, %v1979
        %v1982 = vadd.f32 %v1972, %v1979
        %v1983 = vadd.f32 %v1973, %v1979
        %v1984 = vadd.f32 %v1974, %v1979
        %v1985 = vadd.f32 %v1975, %v1979
        %v1986 = vadd.f32 %v1976, %v1979
        %v1987 = vadd.f32 %v1977, %v1979
        %v1988 = vxor.u32 %v1980, 2147483648
        %v1989 = vxor.u32 %v1981, 2147483648
        %v1990 = vxor.u32 %v1982, 2147483648
        %v1991 = vxor.u32 %v1983, 2147483648
        %v1992 = vxor.u32 %v1984, 2147483648
        %v1993 = vxor.u32 %v1985, 2147483648
        %v1994 = vxor.u32 %v1986, 2147483648
        %v1995 = vxor.u32 %v1987, 2147483648
        %v1996 = vmul.f32 %v1988, 1.442695
        %v1997 = vpow.pop %v1996
        %v1998 = vmul.f32 %v1989, 1.442695
        %v1999 = vpow.pop %v1998
        %v2000 = vmul.f32 %v1990, 1.442695
        %v2001 = vpow.pop %v2000
        %v2002 = vmul.f32 %v1991, 1.442695
        %v2003 = vpow.pop %v2002
        %v2004 = vmul.f32 %v1992, 1.442695
        %v2005 = vpow.pop %v2004
        %v2006 = vmul.f32 %v1993, 1.442695
        %v2007 = vpow.pop %v2006
        %v2008 = vmul.f32 %v1994, 1.442695
        %v2009 = vpow.pop %v2008
        %v2010 = vmul.f32 %v1995, 1.442695
        %v2011 = vpow.pop %v2010
        %v2012 = vadd.f32 %v1997, 1.0
        %v2013 = vadd.f32 %v1999, 1.0
        %v2014 = vadd.f32 %v2001, 1.0
        %v2015 = vadd.f32 %v2003, 1.0
        %v2016 = vadd.f32 %v2005, 1.0
        %v2017 = vadd.f32 %v2007, 1.0
        %v2018 = vadd.f32 %v2009, 1.0
        %v2019 = vadd.f32 %v2011, 1.0
        %v2020 = vrcp.pop %v2012
        %v2021 = vmul.f32 1.0, %v2020
        %v2022 = vrcp.pop %v2013
        %v2023 = vmul.f32 1.0, %v2022
        %v2024 = vrcp.pop %v2014
        %v2025 = vmul.f32 1.0, %v2024
        %v2026 = vrcp.pop %v2015
        %v2027 = vmul.f32 1.0, %v2026
        %v2028 = vrcp.pop %v2016
        %v2029 = vmul.f32 1.0, %v2028
        %v2030 = vrcp.pop %v2017
        %v2031 = vmul.f32 1.0, %v2030
        %v2032 = vrcp.pop %v2018
        %v2033 = vmul.f32 1.0, %v2032
        %v2034 = vrcp.pop %v2019
        %v2035 = vmul.f32 1.0, %v2034
        %vm2036 = vcmask 523264
        %2037 = vst.msk [vmem:[%s667] sm:$0xff] %vm2036, %v2021
        %2038 = vst.msk [vmem:[%s667 + $0x8] sm:$0xff] %vm2036, %v2023
        %2039 = vst.msk [vmem:[%s667 + $0x10] sm:$0xff] %vm2036, %v2025
        %2040 = vst.msk [vmem:[%s667 + $0x18] sm:$0xff] %vm2036, %v2027
        %2041 = vst.msk [vmem:[%s667 + $0x20] sm:$0xff] %vm2036, %v2029
        %2042 = vst.msk [vmem:[%s667 + $0x28] sm:$0xff] %vm2036, %v2031
        %2043 = vst.msk [vmem:[%s667 + $0x30] sm:$0xff] %vm2036, %v2033
        %2044 = vst.msk [vmem:[%s667 + $0x38] sm:$0xff] %vm2036, %v2035
        %s2045 = sand.u32 %s439, 1
        %s2046 = scalar_lea.sflag [#allocation4], %s2045
        %s2047 = sand.u32 %s439, 1
        %s2048 = smul.addr %s2047, 64
        %s2049 = scalar_lea.vmem [#allocation3], %s2048
        // Predicated region
        $region85: #{hnn_forward.1} parent=83 // pred_check
          %p2050 = pneg %p449
        $region86: #{hnn_forward.1} parent=83 // pred_check_branch
          %2052 = sbr.rel (%p2050) target = $region88
        $region87: #{hnn_forward.1} parent=83 // pred_region
          %s2053 = smul.u32 8, %s36
          %s2055 = ssub.s32 1024, 1024
          %2056 = vsyncadd %s2046, %s2055
          %s2057 = smul.addr %s35, 8
          %s2058 = sadd.s32 %s2053, %s2057
          %s2059 = smul.addr %s2058, 128
          %s2060 = scalar_lea.hbm %s16, %s2059
          %s2061 = sshll.u32 %s2049, 4
          %s2062 = int_to_ptr.vmem [resolvable:$true] %s2061
          %2067 = dma.vmem_to_hbm [thread:$0]  %s2062, 1024, %s2060, %s2046, 128, 128, 8
        $region88: #{hnn_forward.1} parent=83 // pred_fallthru
          _
      $region84: #{hnn_forward.1} parent=5 // pred_fallthru
        _
      %p2068 = scmp.le.s32.totalorder 2, %s26
      // Predicated region
      $region89: #{hnn_forward.1} parent=5 // pred_check
        %p2069 = pneg %p2068
      $region90: #{hnn_forward.1} parent=5 // pred_check_branch
        %2071 = sbr.rel (%p2069) target = $region92
      $region91: #{hnn_forward.1} parent=5 // pred_region
        %s2072 = ssub.s32 %s26, 2
        // Predicated region
        $region93: #{hnn_forward.1} parent=91 // pred_check
          %p2073 = pneg %p455
        $region94: #{hnn_forward.1} parent=91 // pred_check_branch
          %2075 = sbr.rel (%p2073) target = $region96
        $region95: #{hnn_forward.1} parent=91 // pred_region
          %s2076 = sand.u32 %s440, 1
          %s2077 = scalar_lea.sflag [#allocation4], %s2076
          %s2078 = sand.u32 %s440, 1
          %s2079 = smul.addr %s2078, 64
          %s2080 = scalar_lea.vmem [#allocation3], %s2079
          %2081 = dma.done %s2077, 1024
        $region96: #{hnn_forward.1} parent=91 // pred_fallthru
          _
      $region92: #{hnn_forward.1} parent=5 // pred_fallthru
        _
    $region6: #{hnn_forward.1} parent=1 // loop_footer
      %s30 = sadd.s32 1, %s26
    $region7: #{hnn_forward.1} parent=1 // loop_footer_branch
      %25 = sbr.rel target = $region3
    $region8: #{hnn_forward.1} parent=1 // loop_exit
      _
    %2082 = vsyncpa [#allocation4], 1
    %s2083 = scalar_lea.sflag [#allocation4], 1
    %2084 = vsyncpa %s2083, 1

</llo_original>
